<compile_context>
chip_gen: v7x
topology: tpu7x:2x2x1
jax: 0.10.0
libtpu: 0.0.40
codegen_flags: <defaults>
</compile_context>

<pallas_src>
import functools

import jax
import jax.numpy as jnp
from jax.experimental import pallas as pl
from jax.experimental.pallas import tpu as pltpu

HIDDEN = 768
NUM_PATTERNS = 10
NUM_BEHAVIORS = 5
PACKED = 128  # packed lane-dense output: [threat(1) | patterns(10) | behaviors(5) | pad]

_THREAT_LO = 0
_PAT_LO = 1
_PAT_HI = 1 + NUM_PATTERNS
_BEH_LO = _PAT_HI
_BEH_HI = _PAT_HI + NUM_BEHAVIORS

_NEG_BIG = -1e30  # plain Python float -> jaxpr literal, never a captured Array


def _threat_heads_kernel(x_ref, w_ref, b_ref, out_ref, acc_ref, *,
                         seq_len, ragged_seq):
    # x_ref: (TB, TS, H) feature tile; w_ref: (H, PACKED); b_ref: (1, PACKED)
    # out_ref: (TB, PACKED) packed outputs; acc_ref: (TB, H) f32 running sum.
    s = pl.program_id(1)
    ts = x_ref.shape[1]

    @pl.when(s == 0)
    def _():
        acc_ref[...] = jnp.zeros_like(acc_ref)

    # f32 accumulation regardless of feature dtype (bf16 inputs stay accurate).
    xf = x_ref[...].astype(jnp.float32)
    if ragged_seq:
        # Mask the ragged tail: stale/garbage rows beyond the true sequence
        # length must not reach the accumulator.
        valid = seq_len - s * ts                      # traced int32 scalar
        row = jax.lax.broadcasted_iota(jnp.int32, (ts, 1), 0)
        xf = jnp.where(row < valid, xf, 0.0)          # (TS,1) bcasts as (1,TS,1)
    acc_ref[...] += jnp.sum(xf, axis=1)

    @pl.when(s == pl.num_programs(1) - 1)
    def _():
        pooled = acc_ref[...] * (1.0 / float(seq_len))            # (TB, H)
        # One fused MXU matmul for all three heads (padded to 128 lanes).
        logits = jnp.dot(pooled, w_ref[...],
                         preferred_element_type=jnp.float32,
                         precision=jax.lax.Precision.HIGHEST) + b_ref[...]
        lane = jax.lax.broadcasted_iota(jnp.int32, logits.shape, 1)

        # threat head: exact sigmoid (tolerance matters; runs once per tile).
        threat = 1.0 / (1.0 + jnp.exp(-logits))

        def masked_softmax(lo, hi):
            m = (lane >= lo) & (lane < hi)
            masked = jnp.where(m, logits, _NEG_BIG)
            mx = jnp.max(masked, axis=-1, keepdims=True)
            e = jnp.where(m, jnp.exp(masked - mx), 0.0)
            return e / jnp.sum(e, axis=-1, keepdims=True)

        pat = masked_softmax(_PAT_LO, _PAT_HI)
        beh = masked_softmax(_BEH_LO, _BEH_HI)

        out = jnp.where(lane == _THREAT_LO, threat, 0.0)
        out = jnp.where((lane >= _PAT_LO) & (lane < _PAT_HI), pat, out)
        out = jnp.where((lane >= _BEH_LO) & (lane < _BEH_HI), beh, out)
        out_ref[...] = out


def _pick_batch_tile(B):
    """Multiple-of-8 tile (or B itself when B<=8); >=2 programs whenever B>8
    so both v7x TensorCores stream HBM. Ragged tails use cdiv + dropped OOB
    output writes (reduction is per batch-row, so no cross-row corruption)."""
    if B <= 8:
        return B
    for tb in (32, 16, 8):
        if B >= 2 * tb:
            return tb
    return 8


def _pick_seq_tile(S, preferred=512):
    """Bounded sequence tile; ragged tails are masked inside the kernel."""
    if S <= preferred:
        return S                       # block == full dim -> always legal
    return preferred - (preferred % 8)


def _vmem_need_bytes(TB, TS, feat_itemsize):
    """All double-buffered operands + scratch + Mosaic internal headroom."""
    feat = TB * TS * HIDDEN * feat_itemsize
    wts = HIDDEN * PACKED * 4 + 8 * PACKED * 4        # fused weight + bias
    out = max(TB, 8) * PACKED * 4
    acc = max(TB, 8) * HIDDEN * 4
    return 2 * feat + 2 * wts + 2 * out + acc + (2 << 20)


def _pack_params(params):
    """Fuse the three heads into one (768, 128) weight and (1, 128) bias."""
    w = jnp.zeros((HIDDEN, PACKED), jnp.float32)
    w = w.at[:, _THREAT_LO:_THREAT_LO + 1].set(params["w_threat"].astype(jnp.float32))
    w = w.at[:, _PAT_LO:_PAT_HI].set(params["w_pattern"].astype(jnp.float32))
    w = w.at[:, _BEH_LO:_BEH_HI].set(params["w_behavior"].astype(jnp.float32))
    b = jnp.zeros((1, PACKED), jnp.float32)
    b = b.at[:, _THREAT_LO:_THREAT_LO + 1].set(params["b_threat"].astype(jnp.float32))
    b = b.at[:, _PAT_LO:_PAT_HI].set(params["b_pattern"].astype(jnp.float32))
    b = b.at[:, _BEH_LO:_BEH_HI].set(params["b_behavior"].astype(jnp.float32))
    return w, b


def threat_detector_forward(features, params):
    """features: (B, S, 768) f32 or bf16 (bf16 halves HBM traffic; accumulation
    stays f32 in-kernel). Returns dict of threat_score / patterns / behaviors."""
    B, S, H = features.shape
    assert H == HIDDEN
    itemsize = features.dtype.itemsize

    TB = _pick_batch_tile(B)
    TS = _pick_seq_tile(S)

    # Per-generation VMEM budget (v5e/v6e: 128 MiB, v7x: 64 MiB physical).
    try:
        vmem_cap = int(pltpu.get_tpu_info().vmem_capacity_bytes)
    except Exception:  # pragma: no cover - conservative fallback (v7x size)
        vmem_cap = 64 << 20
    budget = min(int(vmem_cap * 0.85), 100 << 20)

    # Shrink the sequence tile until everything (double-buffered) fits.
    while _vmem_need_bytes(TB, TS, itemsize) > budget and TS > 8:
        TS = max(8, (TS // 2) // 8 * 8)

    nb = (B + TB - 1) // TB
    ns = (S + TS - 1) // TS
    ragged_seq = (S % TS) != 0

    w_cat, b_cat = _pack_params(params)

    vmem_limit = int(min(budget, max(_vmem_need_bytes(TB, TS, itemsize), 32 << 20)))

    cost = pl.CostEstimate(
        flops=int(B * S * HIDDEN + 2 * B * HIDDEN * PACKED),
        transcendentals=int(3 * B * PACKED),
        bytes_accessed=int(B * S * HIDDEN * itemsize
                           + B * PACKED * 4
                           + (HIDDEN + 1) * PACKED * 4),
    )

    kernel = functools.partial(_threat_heads_kernel,
                               seq_len=S, ragged_seq=ragged_seq)

    packed = pl.pallas_call(
        kernel,
        out_shape=jax.ShapeDtypeStruct((B, PACKED), jnp.float32),
        grid_spec=pltpu.PrefetchScalarGridSpec(
            num_scalar_prefetch=0,
            grid=(nb, ns),
            in_specs=[
                # features: tiled over (batch, sequence)
                pl.BlockSpec((TB, TS, HIDDEN), lambda b, s: (b, s, 0)),
                # fused weights / bias: constant index_map -> DMA'd once, resident
                pl.BlockSpec((HIDDEN, PACKED), lambda b, s: (0, 0)),
                pl.BlockSpec((1, PACKED), lambda b, s: (0, 0)),
            ],
            out_specs=pl.BlockSpec((TB, PACKED), lambda b, s: (b, 0)),
            scratch_shapes=[pltpu.VMEM((TB, HIDDEN), jnp.float32)],
        ),
        compiler_params=pltpu.CompilerParams(
            dimension_semantics=("parallel", "arbitrary"),
            vmem_limit_bytes=vmem_limit,
        ),
        cost_estimate=cost,
    )(features, w_cat, b_cat)

    return {
        "threat_score": packed[:, _THREAT_LO:_THREAT_LO + 1],
        "patterns": packed[:, _PAT_LO:_PAT_HI],
        "behaviors": packed[:, _BEH_LO:_BEH_HI],
    }


def init_params(key):
    """Deterministic synthetic weights, stored as (in, out) for direct matmul."""
    k = jax.random.split(key, 6)
    scale = 1.0 / jnp.sqrt(jnp.float32(HIDDEN))
    return {
        "w_threat": jax.random.normal(k[0], (HIDDEN, 1), jnp.float32) * scale,
        "b_threat": jax.random.normal(k[1], (1, 1), jnp.float32) * 0.01,
        "w_pattern": jax.random.normal(k[2], (HIDDEN, NUM_PATTERNS), jnp.float32) * scale,
        "b_pattern": jax.random.normal(k[3], (1, NUM_PATTERNS), jnp.float32) * 0.01,
        "w_behavior": jax.random.normal(k[4], (HIDDEN, NUM_BEHAVIORS), jnp.float32) * scale,
        "b_behavior": jax.random.normal(k[5], (1, NUM_BEHAVIORS), jnp.float32) * 0.01,
    }


def _reference(features, params):
    pooled = jnp.mean(features.astype(jnp.float32), axis=1)
    t = jax.nn.sigmoid(pooled @ params["w_threat"] + params["b_threat"])
    p = jax.nn.softmax(pooled @ params["w_pattern"] + params["b_pattern"], axis=-1)
    b = jax.nn.softmax(pooled @ params["w_behavior"] + params["b_behavior"], axis=-1)
    return {"threat_score": t, "patterns": p, "behaviors": b}


if __name__ == "__main__":
    key = jax.random.PRNGKey(0)
    k_feat, k_params = jax.random.split(key)

    B, S = 2, 8  # small batch / sequence; hidden fixed at 768 by the heads
    params = init_params(k_params)

    # f32 features: tight check against the f32 reference.
    features = jax.random.normal(k_feat, (B, S, HIDDEN), jnp.float32)
    out = jax.block_until_ready(threat_detector_forward(features, params))
    ref = _reference(features, params)
    for name in ("threat_score", "patterns", "behaviors"):
        assert out[name].shape == ref[name].shape, name
        assert jnp.allclose(out[name], ref[name], atol=1e-5, rtol=1e-5), name

    # bf16 features (the recommended production path: halves HBM traffic).
    features_bf16 = features.astype(jnp.bfloat16)
    out_bf = jax.block_until_ready(threat_detector_forward(features_bf16, params))
    ref_bf = _reference(features_bf16, params)
    for name in ("threat_score", "patterns", "behaviors"):
        assert jnp.allclose(out_bf[name], ref_bf[name], atol=1e-4, rtol=1e-4), name

    print("KERNEL_OK")
</pallas_src>

<mosaic_0001>
module attributes {stable_mosaic.version = 11 : i64} {
  func.func @_threat_heads_kernel(%arg0: i32, %arg1: i32, %arg2: memref<2x8x768xf32, #tpu.memory_space<vmem>>, %arg3: memref<768x128xf32, #tpu.memory_space<vmem>>, %arg4: memref<1x128xf32, #tpu.memory_space<vmem>>, %arg5: memref<2x128xf32, #tpu.memory_space<vmem>>, %arg6: memref<2x768xf32, #tpu.memory_space<vmem>>) attributes {dimension_semantics = [#tpu.dimension_semantics<parallel>, #tpu.dimension_semantics<arbitrary>], iteration_bounds = array<i64: 1, 1>, scalar_prefetch = 0 : i64, scratch_operands = 1 : i64, tpu.core_type = #tpu.core_type<tc>, window_params = [{transform_indices = @transform_0, window_bounds = array<i64: 2, 8, 768>}, {pipeline_mode = #tpu.pipeline_mode<synchronous>, transform_indices = @transform_1, window_bounds = array<i64: 768, 128>}, {pipeline_mode = #tpu.pipeline_mode<synchronous>, transform_indices = @transform_2, window_bounds = array<i64: 1, 128>}, {transform_indices = @transform_3, window_bounds = array<i64: 2, 128>}]} {
    %c0_i32 = arith.constant 0 : i32
    %0 = arith.cmpi eq, %arg1, %c0_i32 : i32
    %1 = arith.extui %0 : i1 to i32
    %c0_i32_0 = arith.constant 0 : i32
    %2 = arith.cmpi ne, %1, %c0_i32_0 : i32
    scf.if %2 {
      %cst_9 = arith.constant 0.000000e+00 : f32
      %11 = vector.broadcast %cst_9 : f32 to vector<2x768xf32>
      %c0_10 = arith.constant 0 : index
      %c0_11 = arith.constant 0 : index
      %12 = vector.load %arg6[%c0_10, %c0_11] : memref<2x768xf32, #tpu.memory_space<vmem>>, vector<2x768xf32>
      tpu.vector_store %arg6[%c0_10, %c0_11], %11 {strides = array<i32>} : memref<2x768xf32, #tpu.memory_space<vmem>>, vector<2x768xf32>,
    } else {
    }
    %c0 = arith.constant 0 : index
    %c0_1 = arith.constant 0 : index
    %c0_2 = arith.constant 0 : index
    %3 = vector.load %arg2[%c0, %c0_1, %c0_2] : memref<2x8x768xf32, #tpu.memory_space<vmem>>, vector<2x8x768xf32>
    %c0_3 = arith.constant 0 : index
    %c0_4 = arith.constant 0 : index
    %4 = vector.load %arg6[%c0_3, %c0_4] : memref<2x768xf32, #tpu.memory_space<vmem>>, vector<2x768xf32>
    %cst = arith.constant dense<0.000000e+00> : vector<2x768xf32>
    %5 = vector.multi_reduction <add>, %3, %cst [1] : vector<2x8x768xf32> to vector<2x768xf32>
    %6 = arith.addf %4, %5 : vector<2x768xf32>
    %c0_5 = arith.constant 0 : index
    %c0_6 = arith.constant 0 : index
    %7 = vector.load %arg6[%c0_5, %c0_6] : memref<2x768xf32, #tpu.memory_space<vmem>>, vector<2x768xf32>
    tpu.vector_store %arg6[%c0_5, %c0_6], %6 {strides = array<i32>} : memref<2x768xf32, #tpu.memory_space<vmem>>, vector<2x768xf32>,
    %c0_i32_7 = arith.constant 0 : i32
    %8 = arith.cmpi eq, %arg1, %c0_i32_7 : i32
    %9 = arith.extui %8 : i1 to i32
    %c0_i32_8 = arith.constant 0 : i32
    %10 = arith.cmpi ne, %9, %c0_i32_8 : i32
    scf.if %10 {
      %c0_9 = arith.constant 0 : index
      %c0_10 = arith.constant 0 : index
      %11 = vector.load %arg6[%c0_9, %c0_10] : memref<2x768xf32, #tpu.memory_space<vmem>>, vector<2x768xf32>
      %cst_11 = arith.constant 1.250000e-01 : f32
      %12 = vector.broadcast %cst_11 : f32 to vector<2x768xf32>
      %13 = arith.mulf %11, %12 : vector<2x768xf32>
      %c0_12 = arith.constant 0 : index
      %c0_13 = arith.constant 0 : index
      %14 = vector.load %arg3[%c0_12, %c0_13] : memref<768x128xf32, #tpu.memory_space<vmem>>, vector<768x128xf32>
      %cst_14 = arith.constant dense<0.000000e+00> : vector<2x128xf32>
      %15 = tpu.matmul %13, %14, %cst_14 {dimension_numbers = #tpu.dot_dimension_numbers<[1], [0], [0], [1], [0, 0, 1, 1], [], []>, precision = #tpu.contract_precision<fp32>} : vector<2x768xf32>, vector<768x128xf32>, vector<2x128xf32> -> vector<2x128xf32>
      %c0_15 = arith.constant 0 : index
      %c0_16 = arith.constant 0 : index
      %16 = vector.load %arg4[%c0_15, %c0_16] : memref<1x128xf32, #tpu.memory_space<vmem>>, vector<1x128xf32>
      %17 = vector.broadcast %16 : vector<1x128xf32> to vector<2x128xf32>
      %18 = arith.addf %15, %17 : vector<2x128xf32>
      %19 = tpu.iota {dimensions = array<i32: 1>} : vector<2x128xi32>
      %cst_17 = arith.constant 0.000000e+00 : f32
      %20 = vector.broadcast %cst_17 : f32 to vector<2x128xf32>
      %21 = arith.subf %20, %18 : vector<2x128xf32>
      %22 = math.exp %21 : vector<2x128xf32>
      %cst_18 = arith.constant 1.000000e+00 : f32
      %23 = vector.broadcast %cst_18 : f32 to vector<2x128xf32>
      %24 = arith.addf %23, %22 : vector<2x128xf32>
      %cst_19 = arith.constant 1.000000e+00 : f32
      %25 = vector.broadcast %cst_19 : f32 to vector<2x128xf32>
      %26 = arith.divf %25, %24 : vector<2x128xf32>
      %c1_i32 = arith.constant 1 : i32
      %27 = vector.broadcast %c1_i32 : i32 to vector<2x128xi32>
      %28 = arith.cmpi sge, %19, %27 : vector<2x128xi32>
      %c11_i32 = arith.constant 11 : i32
      %29 = vector.broadcast %c11_i32 : i32 to vector<2x128xi32>
      %30 = arith.cmpi slt, %19, %29 : vector<2x128xi32>
      %31 = arith.andi %28, %30 : vector<2x128xi1>
      %cst_20 = arith.constant -1.000000e+30 : f32
      %32 = vector.broadcast %cst_20 : f32 to vector<2x128xf32>
      %33 = arith.select %31, %18, %32 : vector<2x128xi1>, vector<2x128xf32>
      %cst_21 = arith.constant dense<0xFF800000> : vector<2xf32>
      %34 = vector.multi_reduction <maximumf>, %33, %cst_21 [1] : vector<2x128xf32> to vector<2xf32>
      %35 = vector.shape_cast %34 : vector<2xf32> to vector<2x1xf32>
      %36 = vector.broadcast %35 : vector<2x1xf32> to vector<2x128xf32>
      %37 = arith.subf %33, %36 : vector<2x128xf32>
      %38 = math.exp %37 : vector<2x128xf32>
      %cst_22 = arith.constant 0.000000e+00 : f32
      %39 = vector.broadcast %cst_22 : f32 to vector<2x128xf32>
      %40 = arith.select %31, %38, %39 : vector<2x128xi1>, vector<2x128xf32>
      %cst_23 = arith.constant dense<0.000000e+00> : vector<2xf32>
      %41 = vector.multi_reduction <add>, %40, %cst_23 [1] : vector<2x128xf32> to vector<2xf32>
      %42 = vector.shape_cast %41 : vector<2xf32> to vector<2x1xf32>
      %43 = vector.broadcast %42 : vector<2x1xf32> to vector<2x128xf32>
      %44 = arith.divf %40, %43 : vector<2x128xf32>
      %c11_i32_24 = arith.constant 11 : i32
      %45 = vector.broadcast %c11_i32_24 : i32 to vector<2x128xi32>
      %46 = arith.cmpi sge, %19, %45 : vector<2x128xi32>
      %c16_i32 = arith.constant 16 : i32
      %47 = vector.broadcast %c16_i32 : i32 to vector<2x128xi32>
      %48 = arith.cmpi slt, %19, %47 : vector<2x128xi32>
      %49 = arith.andi %46, %48 : vector<2x128xi1>
      %cst_25 = arith.constant -1.000000e+30 : f32
      %50 = vector.broadcast %cst_25 : f32 to vector<2x128xf32>
      %51 = arith.select %49, %18, %50 : vector<2x128xi1>, vector<2x128xf32>
      %cst_26 = arith.constant dense<0xFF800000> : vector<2xf32>
      %52 = vector.multi_reduction <maximumf>, %51, %cst_26 [1] : vector<2x128xf32> to vector<2xf32>
      %53 = vector.shape_cast %52 : vector<2xf32> to vector<2x1xf32>
      %54 = vector.broadcast %53 : vector<2x1xf32> to vector<2x128xf32>
      %55 = arith.subf %51, %54 : vector<2x128xf32>
      %56 = math.exp %55 : vector<2x128xf32>
      %cst_27 = arith.constant 0.000000e+00 : f32
      %57 = vector.broadcast %cst_27 : f32 to vector<2x128xf32>
      %58 = arith.select %49, %56, %57 : vector<2x128xi1>, vector<2x128xf32>
      %cst_28 = arith.constant dense<0.000000e+00> : vector<2xf32>
      %59 = vector.multi_reduction <add>, %58, %cst_28 [1] : vector<2x128xf32> to vector<2xf32>
      %60 = vector.shape_cast %59 : vector<2xf32> to vector<2x1xf32>
      %61 = vector.broadcast %60 : vector<2x1xf32> to vector<2x128xf32>
      %62 = arith.divf %58, %61 : vector<2x128xf32>
      %c0_i32_29 = arith.constant 0 : i32
      %63 = vector.broadcast %c0_i32_29 : i32 to vector<2x128xi32>
      %64 = arith.cmpi eq, %19, %63 : vector<2x128xi32>
      %cst_30 = arith.constant 0.000000e+00 : f32
      %65 = vector.broadcast %cst_30 : f32 to vector<2x128xf32>
      %66 = arith.select %64, %26, %65 : vector<2x128xi1>, vector<2x128xf32>
      %c1_i32_31 = arith.constant 1 : i32
      %67 = vector.broadcast %c1_i32_31 : i32 to vector<2x128xi32>
      %68 = arith.cmpi sge, %19, %67 : vector<2x128xi32>
      %c11_i32_32 = arith.constant 11 : i32
      %69 = vector.broadcast %c11_i32_32 : i32 to vector<2x128xi32>
      %70 = arith.cmpi slt, %19, %69 : vector<2x128xi32>
      %71 = arith.andi %68, %70 : vector<2x128xi1>
      %72 = arith.select %71, %44, %66 : vector<2x128xi1>, vector<2x128xf32>
      %c11_i32_33 = arith.constant 11 : i32
      %73 = vector.broadcast %c11_i32_33 : i32 to vector<2x128xi32>
      %74 = arith.cmpi sge, %19, %73 : vector<2x128xi32>
      %c16_i32_34 = arith.constant 16 : i32
      %75 = vector.broadcast %c16_i32_34 : i32 to vector<2x128xi32>
      %76 = arith.cmpi slt, %19, %75 : vector<2x128xi32>
      %77 = arith.andi %74, %76 : vector<2x128xi1>
      %78 = arith.select %77, %62, %72 : vector<2x128xi1>, vector<2x128xf32>
      %c0_35 = arith.constant 0 : index
      %c0_36 = arith.constant 0 : index
      %79 = vector.load %arg5[%c0_35, %c0_36] : memref<2x128xf32, #tpu.memory_space<vmem>>, vector<2x128xf32>
      tpu.vector_store %arg5[%c0_35, %c0_36], %78 {strides = array<i32>} : memref<2x128xf32, #tpu.memory_space<vmem>>, vector<2x128xf32>,
    } else {
    }
    return
  }
  func.func @transform_0(%arg0: i32, %arg1: i32) -> (i32, i32, i32) {
    %c0_i32 = arith.constant 0 : i32
    %c0_i32_0 = arith.constant 0 : i32
    return %arg0, %arg1, %c0_i32 : i32, i32, i32
  }
  func.func @transform_1(%arg0: i32, %arg1: i32) -> (i32, i32) {
    %c0_i32 = arith.constant 0 : i32
    %c0_i32_0 = arith.constant 0 : i32
    %c0_i32_1 = arith.constant 0 : i32
    return %c0_i32, %c0_i32_0 : i32, i32
  }
  func.func @transform_2(%arg0: i32, %arg1: i32) -> (i32, i32) {
    %c0_i32 = arith.constant 0 : i32
    %c0_i32_0 = arith.constant 0 : i32
    %c0_i32_1 = arith.constant 0 : i32
    return %c0_i32, %c0_i32_0 : i32, i32
  }
  func.func @transform_3(%arg0: i32, %arg1: i32) -> (i32, i32) {
    %c0_i32 = arith.constant 0 : i32
    %c0_i32_0 = arith.constant 0 : i32
    return %arg0, %c0_i32 : i32, i32
  }
}

</mosaic_0001>

<llo_original>
// kernel: tpu_custom_call.1
$region0: #{tpu_custom_call.1}
  #allocation0 [shape = 'u32[]', space=smem, size = 0x4, offset = 0x4, fixed_abs, tag = 'smem constant byte address 0x4 - core index']
  #allocation1 [shape = 'u32[144,128]{1,0:T(1,128)}', space=vmem, size = 0x12000, scoped, tag = 'internal scratch']
  #allocation2 [shape = 'f32[2,768]{1,0:T(2,128)}', space=vmem, size = 0x1800, scoped, tag = 'scratch operand']
  %s0 = inlined_call_operand.hbm [shape: f32[2,8,768], index: 0, kind: input, shape index: {}]
  %s1 = inlined_call_operand.hbm [shape: f32[768,128], index: 1, kind: input, shape index: {}]
  %s2 = inlined_call_operand.vmem [shape: f32[1,128], index: 2, kind: input, shape index: {}]
  %s3 = inlined_call_operand.hbm [shape: f32[2,128], index: 3, kind: output, shape index: {}]
  %s4 = sld [smem:[#allocation0]]
  $region38: #{tpu_custom_call.1} parent=0
    _
  %s6 = ssub.s32 1, %s4
  %s7 = scalar_select 0, %s6, %s4
  $region1: #{tpu_custom_call.1} parent=0
    #allocation3 [shape = 'u8[49152]{0}', space=vmem, size = 0xc000, scoped, tag = 'input window, operand 0, single buffered']
    #allocation4 [shape = 's32[1]{0}', space=sflag, size = 0x4, scoped, tag = 'scoped memory for tpu_custom_call.1']
    #allocation5 [shape = 's32[1]{0}', space=sflag, size = 0x4, scoped, tag = 'scoped memory for tpu_custom_call.1']
    #allocation6 [shape = 'u8[393216]{0}', space=vmem, size = 0x60000, scoped, tag = 'input window, operand 1, single buffered']
    #allocation7 [shape = 's32[1]{0}', space=sflag, size = 0x4, scoped, tag = 'scoped memory for tpu_custom_call.1']
    #allocation8 [shape = 'u8[1024]{0}', space=vmem, size = 0x400, scoped, tag = 'output window, operand 0, single buffered']
    %8 = vsyncpa [#allocation4], 0
    %9 = vsyncpa [#allocation7], 0
    %10 = vsyncpa [#allocation5], 0
    // Predicated region
    $region2: #{tpu_custom_call.1} parent=1 // pred_check
      _
    $region3: #{tpu_custom_call.1} parent=1 // pred_check_branch
      %12 = sbr.rel (0) target = $region5
    $region4: #{tpu_custom_call.1} parent=1 // pred_region
      %s14 = ssub.s32 1536, 1536
      %15 = vsyncadd [#allocation4], %s14
      %s16 = sshll.u32 [#allocation3], 4
      %s17 = int_to_ptr.vmem [resolvable:$true] %s16
      %22 = dma.hbm_to_vmem [thread:$0]  %s0, 1536, %s17, [#allocation4], 768, 768, 48
    $region5: #{tpu_custom_call.1} parent=1 // pred_fallthru
      _
    // Predicated region
    $region6: #{tpu_custom_call.1} parent=1 // pred_check
      _
    $region7: #{tpu_custom_call.1} parent=1 // pred_check_branch
      %24 = sbr.rel (0) target = $region9
    $region8: #{tpu_custom_call.1} parent=1 // pred_region
      %s26 = ssub.s32 12288, 12288
      %27 = vsyncadd [#allocation7], %s26
      %s28 = sshll.u32 [#allocation6], 4
      %s29 = int_to_ptr.vmem [resolvable:$true] %s28
      %34 = dma.hbm_to_vmem [thread:$0]  %s1, 12288, %s29, [#allocation7], 128, 128, 8
    $region9: #{tpu_custom_call.1} parent=1 // pred_fallthru
      _
    // Predicated region
    $region10: #{tpu_custom_call.1} parent=1 // pred_check
      _
    $region11: #{tpu_custom_call.1} parent=1 // pred_check_branch
      %36 = sbr.rel (0) target = $region13
    $region12: #{tpu_custom_call.1} parent=1 // pred_region
      _
    $region13: #{tpu_custom_call.1} parent=1 // pred_fallthru
      _
    // Predicated region
    $region14: #{tpu_custom_call.1} parent=1 // pred_check
      _
    $region15: #{tpu_custom_call.1} parent=1 // pred_check_branch
      %38 = sbr.rel (0) target = $region17
    $region16: #{tpu_custom_call.1} parent=1 // pred_region
      %39 = dma.done [#allocation4], 1536
    $region17: #{tpu_custom_call.1} parent=1 // pred_fallthru
      _
    // Predicated region
    $region18: #{tpu_custom_call.1} parent=1 // pred_check
      _
    $region19: #{tpu_custom_call.1} parent=1 // pred_check_branch
      %41 = sbr.rel (0) target = $region21
    $region20: #{tpu_custom_call.1} parent=1 // pred_region
      %42 = dma.done [#allocation7], 12288
    $region21: #{tpu_custom_call.1} parent=1 // pred_fallthru
      _
    %p43 = scmp.eq.s32.totalorder 0, 0
    // Predicated region
    $region22: #{tpu_custom_call.1} parent=1 // pred_check
      %p44 = pneg %p43
    $region23: #{tpu_custom_call.1} parent=1 // pred_check_branch
      %46 = sbr.rel (%p44) target = $region25
    $region24: #{tpu_custom_call.1} parent=1 // pred_region
      %47 = vst [vmem:[#allocation2] sm:$0xff] 0.0
      %48 = vst [vmem:[#allocation2 + $0x8] sm:$0xf] 0.0
    $region25: #{tpu_custom_call.1} parent=1 // pred_fallthru
      _
    %v49 = vld [vmem:[#allocation3] sm:$0xff]
    %v50 = vld [vmem:[#allocation3 + $0x8] sm:$0xff]
    %v51 = vld [vmem:[#allocation3 + $0x10] sm:$0xff]
    %v52 = vld [vmem:[#allocation3 + $0x18] sm:$0xff]
    %v53 = vld [vmem:[#allocation3 + $0x20] sm:$0xff]
    %v54 = vld [vmem:[#allocation3 + $0x28] sm:$0xff]
    %v55 = vld [vmem:[#allocation3 + $0x30] sm:$0xff]
    %v56 = vld [vmem:[#allocation3 + $0x38] sm:$0xff]
    %v57 = vld [vmem:[#allocation3 + $0x40] sm:$0xff]
    %v58 = vld [vmem:[#allocation3 + $0x48] sm:$0xff]
    %v59 = vld [vmem:[#allocation3 + $0x50] sm:$0xff]
    %v60 = vld [vmem:[#allocation3 + $0x58] sm:$0xff]
    %v61 = vld [vmem:[#allocation2] sm:$0xff]
    %v62 = vld [vmem:[#allocation2 + $0x8] sm:$0xf]
    %v63 = vrot.slane %v49, 4
    %v64 = vadd.f32 %v49, %v63
    %v65 = vrot.slane %v64, 2
    %v66 = vadd.f32 %v64, %v65
    %v67 = vrot.slane %v66, 1
    %v68 = vadd.f32 %v66, %v67
    %v69 = vrot.slane %v50, 4
    %v70 = vadd.f32 %v50, %v69
    %v71 = vrot.slane %v70, 2
    %v72 = vadd.f32 %v70, %v71
    %v73 = vrot.slane %v72, 1
    %v74 = vadd.f32 %v72, %v73
    %v75 = vrot.slane %v51, 4
    %v76 = vadd.f32 %v51, %v75
    %v77 = vrot.slane %v76, 2
    %v78 = vadd.f32 %v76, %v77
    %v79 = vrot.slane %v78, 1
    %v80 = vadd.f32 %v78, %v79
    %v81 = vrot.slane %v52, 4
    %v82 = vadd.f32 %v52, %v81
    %v83 = vrot.slane %v82, 2
    %v84 = vadd.f32 %v82, %v83
    %v85 = vrot.slane %v84, 1
    %v86 = vadd.f32 %v84, %v85
    %v87 = vrot.slane %v53, 4
    %v88 = vadd.f32 %v53, %v87
    %v89 = vrot.slane %v88, 2
    %v90 = vadd.f32 %v88, %v89
    %v91 = vrot.slane %v90, 1
    %v92 = vadd.f32 %v90, %v91
    %v93 = vrot.slane %v54, 4
    %v94 = vadd.f32 %v54, %v93
    %v95 = vrot.slane %v94, 2
    %v96 = vadd.f32 %v94, %v95
    %v97 = vrot.slane %v96, 1
    %v98 = vadd.f32 %v96, %v97
    %v99 = vrot.slane %v55, 4
    %v100 = vadd.f32 %v55, %v99
    %v101 = vrot.slane %v100, 2
    %v102 = vadd.f32 %v100, %v101
    %v103 = vrot.slane %v102, 1
    %v104 = vadd.f32 %v102, %v103
    %v105 = vrot.slane %v56, 4
    %v106 = vadd.f32 %v56, %v105
    %v107 = vrot.slane %v106, 2
    %v108 = vadd.f32 %v106, %v107
    %v109 = vrot.slane %v108, 1
    %v110 = vadd.f32 %v108, %v109
    %v111 = vrot.slane %v57, 4
    %v112 = vadd.f32 %v57, %v111
    %v113 = vrot.slane %v112, 2
    %v114 = vadd.f32 %v112, %v113
    %v115 = vrot.slane %v114, 1
    %v116 = vadd.f32 %v114, %v115
    %v117 = vrot.slane %v58, 4
    %v118 = vadd.f32 %v58, %v117
    %v119 = vrot.slane %v118, 2
    %v120 = vadd.f32 %v118, %v119
    %v121 = vrot.slane %v120, 1
    %v122 = vadd.f32 %v120, %v121
    %v123 = vrot.slane %v59, 4
    %v124 = vadd.f32 %v59, %v123
    %v125 = vrot.slane %v124, 2
    %v126 = vadd.f32 %v124, %v125
    %v127 = vrot.slane %v126, 1
    %v128 = vadd.f32 %v126, %v127
    %v129 = vrot.slane %v60, 4
    %v130 = vadd.f32 %v60, %v129
    %v131 = vrot.slane %v130, 2
    %v132 = vadd.f32 %v130, %v131
    %v133 = vrot.slane %v132, 1
    %v134 = vadd.f32 %v132, %v133
    %v147 = vcombine.low %v68, %v74
    %v148 = vcombine.low %v80, %v86
    %v150 = vunpack.c.l.s4 1983009808
    %v151 = vunpack.c.0.s8 %v150
    %v152 = vlaneseq
    %v153 = vshrl.u32 %v152, 7
    %v154 = vsub.s32 %v151, %v153
    %v155 = vrot.slane %v147, %v154
    %v157 = vunpack.c.l.s4 1983009808
    %v158 = vunpack.c.0.s8 %v157
    %v159 = vlaneseq
    %v160 = vshrl.u32 %v159, 7
    %v161 = vsub.s32 %v158, %v160
    %v162 = vrot.slane %v148, %v161
    %v163 = vcombine.low %v155, %v162
    %v164 = vcombine.low %v92, %v98
    %v166 = vunpack.c.l.s4 1983009808
    %v167 = vunpack.c.0.s8 %v166
    %v168 = vlaneseq
    %v169 = vshrl.u32 %v168, 7
    %v170 = vsub.s32 %v167, %v169
    %v171 = vrot.slane %v164, %v170
    %v172 = vcombine.low %v104, %v110
    %v173 = vcombine.low %v116, %v122
    %v175 = vunpack.c.l.s4 1983009808
    %v176 = vunpack.c.0.s8 %v175
    %v177 = vlaneseq
    %v178 = vshrl.u32 %v177, 7
    %v179 = vsub.s32 %v176, %v178
    %v180 = vrot.slane %v172, %v179
    %v182 = vunpack.c.l.s4 1983009808
    %v183 = vunpack.c.0.s8 %v182
    %v184 = vlaneseq
    %v185 = vshrl.u32 %v184, 7
    %v186 = vsub.s32 %v183, %v185
    %v187 = vrot.slane %v173, %v186
    %v188 = vcombine.low %v180, %v187
    %v189 = vcombine.low %v128, %v134
    %v191 = vunpack.c.l.s4 1983009808
    %v192 = vunpack.c.0.s8 %v191
    %v193 = vlaneseq
    %v194 = vshrl.u32 %v193, 7
    %v195 = vsub.s32 %v192, %v194
    %v196 = vrot.slane %v189, %v195
    %vm197 = vcmask 1044484
    %v198 = vsel %vm197, %v163, %v163
    %vm199 = vcmask 1046534
    %v200 = vsel %vm199, %v163, %v198
    %v201 = vrot.slane %v188, 7
    %vm202 = vcmask 1041409
    %v203 = vsel %vm202, %v201, %v200
    %vm204 = vcmask 1043459
    %v205 = vsel %vm204, %v201, %v203
    %vm206 = vcmask 1045509
    %v207 = vsel %vm206, %v201, %v205
    %vm208 = vcmask 1047559
    %v209 = vsel %vm208, %v201, %v207
    %v210 = vsel %vm197, %v171, %v171
    %v211 = vsel %vm199, %v171, %v210
    %v212 = vrot.slane %v196, 7
    %v213 = vsel %vm202, %v212, %v211
    %v214 = vsel %vm204, %v212, %v213
    %v215 = vsel %vm206, %v212, %v214
    %v216 = vsel %vm208, %v212, %v215
    %v219 = vadd.f32 %v61, %v209
    %v220 = vadd.f32 %v62, %v216
    %221 = vst [vmem:[#allocation2] sm:$0xff] %v219
    %222 = vst [vmem:[#allocation2 + $0x8] sm:$0xf] %v220
    // Predicated region
    $region26: #{tpu_custom_call.1} parent=1 // pred_check
      %p223 = pneg %p43
    $region27: #{tpu_custom_call.1} parent=1 // pred_check_branch
      %225 = sbr.rel (%p223) target = $region29
    $region28: #{tpu_custom_call.1} parent=1 // pred_region
      %v226 = vld [vmem:[#allocation2] sm:$0xff]
      %v227 = vld [vmem:[#allocation2 + $0x8] sm:$0xf]
      %v228 = vmul.f32 %v226, 0.125
      %v229 = vmul.f32 %v227, 0.125
      %v230 = vld [vmem:[#allocation6] sm:$0xff]
      %v231 = vld [vmem:[#allocation6 + $0x8] sm:$0xff]
      %v232 = vld [vmem:[#allocation6 + $0x10] sm:$0xff]
      %v233 = vld [vmem:[#allocation6 + $0x18] sm:$0xff]
      %v234 = vld [vmem:[#allocation6 + $0x20] sm:$0xff]
      %v235 = vld [vmem:[#allocation6 + $0x28] sm:$0xff]
      %v236 = vld [vmem:[#allocation6 + $0x30] sm:$0xff]
      %v237 = vld [vmem:[#allocation6 + $0x38] sm:$0xff]
      %v238 = vld [vmem:[#allocation6 + $0x40] sm:$0xff]
      %v239 = vld [vmem:[#allocation6 + $0x48] sm:$0xff]
      %v240 = vld [vmem:[#allocation6 + $0x50] sm:$0xff]
      %v241 = vld [vmem:[#allocation6 + $0x58] sm:$0xff]
      %v242 = vld [vmem:[#allocation6 + $0x60] sm:$0xff]
      %v243 = vld [vmem:[#allocation6 + $0x68] sm:$0xff]
      %v244 = vld [vmem:[#allocation6 + $0x70] sm:$0xff]
      %v245 = vld [vmem:[#allocation6 + $0x78] sm:$0xff]
      %v246 = vld [vmem:[#allocation6 + $0x80] sm:$0xff]
      %v247 = vld [vmem:[#allocation6 + $0x88] sm:$0xff]
      %v248 = vld [vmem:[#allocation6 + $0x90] sm:$0xff]
      %v249 = vld [vmem:[#allocation6 + $0x98] sm:$0xff]
      %v250 = vld [vmem:[#allocation6 + $0xa0] sm:$0xff]
      %v251 = vld [vmem:[#allocation6 + $0xa8] sm:$0xff]
      %v252 = vld [vmem:[#allocation6 + $0xb0] sm:$0xff]
      %v253 = vld [vmem:[#allocation6 + $0xb8] sm:$0xff]
      %v254 = vld [vmem:[#allocation6 + $0xc0] sm:$0xff]
      %v255 = vld [vmem:[#allocation6 + $0xc8] sm:$0xff]
      %v256 = vld [vmem:[#allocation6 + $0xd0] sm:$0xff]
      %v257 = vld [vmem:[#allocation6 + $0xd8] sm:$0xff]
      %v258 = vld [vmem:[#allocation6 + $0xe0] sm:$0xff]
      %v259 = vld [vmem:[#allocation6 + $0xe8] sm:$0xff]
      %v260 = vld [vmem:[#allocation6 + $0xf0] sm:$0xff]
      %v261 = vld [vmem:[#allocation6 + $0xf8] sm:$0xff]
      %v262 = vld [vmem:[#allocation6 + $0x100] sm:$0xff]
      %v263 = vld [vmem:[#allocation6 + $0x108] sm:$0xff]
      %v264 = vld [vmem:[#allocation6 + $0x110] sm:$0xff]
      %v265 = vld [vmem:[#allocation6 + $0x118] sm:$0xff]
      %v266 = vld [vmem:[#allocation6 + $0x120] sm:$0xff]
      %v267 = vld [vmem:[#allocation6 + $0x128] sm:$0xff]
      %v268 = vld [vmem:[#allocation6 + $0x130] sm:$0xff]
      %v269 = vld [vmem:[#allocation6 + $0x138] sm:$0xff]
      %v270 = vld [vmem:[#allocation6 + $0x140] sm:$0xff]
      %v271 = vld [vmem:[#allocation6 + $0x148] sm:$0xff]
      %v272 = vld [vmem:[#allocation6 + $0x150] sm:$0xff]
      %v273 = vld [vmem:[#allocation6 + $0x158] sm:$0xff]
      %v274 = vld [vmem:[#allocation6 + $0x160] sm:$0xff]
      %v275 = vld [vmem:[#allocation6 + $0x168] sm:$0xff]
      %v276 = vld [vmem:[#allocation6 + $0x170] sm:$0xff]
      %v277 = vld [vmem:[#allocation6 + $0x178] sm:$0xff]
      %v278 = vld [vmem:[#allocation6 + $0x180] sm:$0xff]
      %v279 = vld [vmem:[#allocation6 + $0x188] sm:$0xff]
      %v280 = vld [vmem:[#allocation6 + $0x190] sm:$0xff]
      %v281 = vld [vmem:[#allocation6 + $0x198] sm:$0xff]
      %v282 = vld [vmem:[#allocation6 + $0x1a0] sm:$0xff]
      %v283 = vld [vmem:[#allocation6 + $0x1a8] sm:$0xff]
      %v284 = vld [vmem:[#allocation6 + $0x1b0] sm:$0xff]
      %v285 = vld [vmem:[#allocation6 + $0x1b8] sm:$0xff]
      %v286 = vld [vmem:[#allocation6 + $0x1c0] sm:$0xff]
      %v287 = vld [vmem:[#allocation6 + $0x1c8] sm:$0xff]
      %v288 = vld [vmem:[#allocation6 + $0x1d0] sm:$0xff]
      %v289 = vld [vmem:[#allocation6 + $0x1d8] sm:$0xff]
      %v290 = vld [vmem:[#allocation6 + $0x1e0] sm:$0xff]
      %v291 = vld [vmem:[#allocation6 + $0x1e8] sm:$0xff]
      %v292 = vld [vmem:[#allocation6 + $0x1f0] sm:$0xff]
      %v293 = vld [vmem:[#allocation6 + $0x1f8] sm:$0xff]
      %v294 = vld [vmem:[#allocation6 + $0x200] sm:$0xff]
      %v295 = vld [vmem:[#allocation6 + $0x208] sm:$0xff]
      %v296 = vld [vmem:[#allocation6 + $0x210] sm:$0xff]
      %v297 = vld [vmem:[#allocation6 + $0x218] sm:$0xff]
      %v298 = vld [vmem:[#allocation6 + $0x220] sm:$0xff]
      %v299 = vld [vmem:[#allocation6 + $0x228] sm:$0xff]
      %v300 = vld [vmem:[#allocation6 + $0x230] sm:$0xff]
      %v301 = vld [vmem:[#allocation6 + $0x238] sm:$0xff]
      %v302 = vld [vmem:[#allocation6 + $0x240] sm:$0xff]
      %v303 = vld [vmem:[#allocation6 + $0x248] sm:$0xff]
      %v304 = vld [vmem:[#allocation6 + $0x250] sm:$0xff]
      %v305 = vld [vmem:[#allocation6 + $0x258] sm:$0xff]
      %v306 = vld [vmem:[#allocation6 + $0x260] sm:$0xff]
      %v307 = vld [vmem:[#allocation6 + $0x268] sm:$0xff]
      %v308 = vld [vmem:[#allocation6 + $0x270] sm:$0xff]
      %v309 = vld [vmem:[#allocation6 + $0x278] sm:$0xff]
      %v310 = vld [vmem:[#allocation6 + $0x280] sm:$0xff]
      %v311 = vld [vmem:[#allocation6 + $0x288] sm:$0xff]
      %v312 = vld [vmem:[#allocation6 + $0x290] sm:$0xff]
      %v313 = vld [vmem:[#allocation6 + $0x298] sm:$0xff]
      %v314 = vld [vmem:[#allocation6 + $0x2a0] sm:$0xff]
      %v315 = vld [vmem:[#allocation6 + $0x2a8] sm:$0xff]
      %v316 = vld [vmem:[#allocation6 + $0x2b0] sm:$0xff]
      %v317 = vld [vmem:[#allocation6 + $0x2b8] sm:$0xff]
      %v318 = vld [vmem:[#allocation6 + $0x2c0] sm:$0xff]
      %v319 = vld [vmem:[#allocation6 + $0x2c8] sm:$0xff]
      %v320 = vld [vmem:[#allocation6 + $0x2d0] sm:$0xff]
      %v321 = vld [vmem:[#allocation6 + $0x2d8] sm:$0xff]
      %v322 = vld [vmem:[#allocation6 + $0x2e0] sm:$0xff]
      %v323 = vld [vmem:[#allocation6 + $0x2e8] sm:$0xff]
      %v324 = vld [vmem:[#allocation6 + $0x2f0] sm:$0xff]
      %v325 = vld [vmem:[#allocation6 + $0x2f8] sm:$0xff]
      %v326 = vld [vmem:[%s2] sm:$0x1]
      %v328 = vlaneseq
      %v329 = vshrl.u32 %v328, 7
      %v330 = vsub.s32 0, %v329
      %v331 = vrot.slane %v326, %v330
      %v335 = vcombine.high %v228, %v228
      %v337 = vunpack.c.l.s4 1983009808
      %v338 = vunpack.c.0.s8 %v337
      %v339 = vlaneseq
      %v340 = vshrl.u32 %v339, 7
      %v341 = vsub.s32 %v338, %v340
      %v342 = vrot.slane %v228, %v341
      %v344 = vunpack.c.l.s4 1983009808
      %v345 = vunpack.c.0.s8 %v344
      %v346 = vlaneseq
      %v347 = vshrl.u32 %v346, 7
      %v348 = vsub.s32 %v345, %v347
      %v349 = vrot.slane %v335, %v348
      %v350 = vcombine.high %v342, %v342
      %v351 = vcombine.high %v349, %v349
      %v353 = vunpack.c.l.s4 1983009808
      %v354 = vunpack.c.0.s8 %v353
      %v355 = vlaneseq
      %v356 = vshrl.u32 %v355, 7
      %v357 = vsub.s32 %v354, %v356
      %v358 = vrot.slane %v229, %v357
      %v359 = vcombine.high %v358, %v358
      %366 = vmatprep.subr.mxu0 0.0
      %v367 = vand.u32 %v230, 4294901760
      %368 = vmatpush1.msra.mxu0 %v367
      %369 = vmatprep.subr.mxu0 0.0
      %v370 = vand.u32 %v231, 4294901760
      %371 = vmatpush1.msra.mxu0 %v370
      %372 = vmatprep.subr.mxu0 0.0
      %v373 = vand.u32 %v232, 4294901760
      %374 = vmatpush1.msra.mxu0 %v373
      %375 = vmatprep.subr.mxu0 0.0
      %v376 = vand.u32 %v233, 4294901760
      %377 = vmatpush1.msra.mxu0 %v376
      %378 = vmatprep.subr.mxu0 0.0
      %v379 = vand.u32 %v234, 4294901760
      %380 = vmatpush1.msra.mxu0 %v379
      %381 = vmatprep.subr.mxu0 0.0
      %v382 = vand.u32 %v235, 4294901760
      %383 = vmatpush1.msra.mxu0 %v382
      %384 = vmatprep.subr.mxu0 0.0
      %v385 = vand.u32 %v236, 4294901760
      %386 = vmatpush1.msra.mxu0 %v385
      %387 = vmatprep.subr.mxu0 0.0
      %v388 = vand.u32 %v237, 4294901760
      %389 = vmatpush1.msra.mxu0 %v388
      %390 = vmatprep.subr.mxu0 0.0
      %v391 = vand.u32 %v238, 4294901760
      %392 = vmatpush1.msra.mxu0 %v391
      %393 = vmatprep.subr.mxu0 0.0
      %v394 = vand.u32 %v239, 4294901760
      %395 = vmatpush1.msra.mxu0 %v394
      %396 = vmatprep.subr.mxu0 0.0
      %v397 = vand.u32 %v240, 4294901760
      %398 = vmatpush1.msra.mxu0 %v397
      %399 = vmatprep.subr.mxu0 0.0
      %v400 = vand.u32 %v241, 4294901760
      %401 = vmatpush1.msra.mxu0 %v400
      %402 = vmatprep.subr.mxu0 0.0
      %v403 = vand.u32 %v242, 4294901760
      %404 = vmatpush1.msra.mxu0 %v403
      %405 = vmatprep.subr.mxu0 0.0
      %v406 = vand.u32 %v243, 4294901760
      %407 = vmatpush1.msra.mxu0 %v406
      %408 = vmatprep.subr.mxu0 0.0
      %v409 = vand.u32 %v244, 4294901760
      %410 = vmatpush1.msra.mxu0 %v409
      %411 = vmatprep.subr.mxu0 0.0
      %v412 = vand.u32 %v245, 4294901760
      %413 = vmatpush1.msra.mxu0 %v412
      %414 = vmatprep.subr.mxu0 0.0
      %v415 = vand.u32 %v246, 4294901760
      %416 = vmatpush1.msra.mxu0 %v415
      %417 = vmatprep.subr.mxu0 0.0
      %v418 = vand.u32 %v247, 4294901760
      %419 = vmatpush1.msra.mxu0 %v418
      %420 = vmatprep.subr.mxu0 0.0
      %v421 = vand.u32 %v248, 4294901760
      %422 = vmatpush1.msra.mxu0 %v421
      %423 = vmatprep.subr.mxu0 0.0
      %v424 = vand.u32 %v249, 4294901760
      %425 = vmatpush1.msra.mxu0 %v424
      %426 = vmatprep.subr.mxu0 0.0
      %v427 = vand.u32 %v250, 4294901760
      %428 = vmatpush1.msra.mxu0 %v427
      %429 = vmatprep.subr.mxu0 0.0
      %v430 = vand.u32 %v251, 4294901760
      %431 = vmatpush1.msra.mxu0 %v430
      %432 = vmatprep.subr.mxu0 0.0
      %v433 = vand.u32 %v252, 4294901760
      %434 = vmatpush1.msra.mxu0 %v433
      %435 = vmatprep.subr.mxu0 0.0
      %v436 = vand.u32 %v253, 4294901760
      %437 = vmatpush1.msra.mxu0 %v436
      %438 = vmatprep.subr.mxu0 0.0
      %v439 = vand.u32 %v254, 4294901760
      %440 = vmatpush1.msra.mxu0 %v439
      %441 = vmatprep.subr.mxu0 0.0
      %v442 = vand.u32 %v255, 4294901760
      %443 = vmatpush1.msra.mxu0 %v442
      %444 = vmatprep.subr.mxu0 0.0
      %v445 = vand.u32 %v256, 4294901760
      %446 = vmatpush1.msra.mxu0 %v445
      %447 = vmatprep.subr.mxu0 0.0
      %v448 = vand.u32 %v257, 4294901760
      %449 = vmatpush1.msra.mxu0 %v448
      %450 = vmatprep.subr.mxu0 0.0
      %v451 = vand.u32 %v258, 4294901760
      %452 = vmatpush1.msra.mxu0 %v451
      %453 = vmatprep.subr.mxu0 0.0
      %v454 = vand.u32 %v259, 4294901760
      %455 = vmatpush1.msra.mxu0 %v454
      %456 = vmatprep.subr.mxu0 0.0
      %v457 = vand.u32 %v260, 4294901760
      %458 = vmatpush1.msra.mxu0 %v457
      %459 = vmatprep.subr.mxu0 0.0
      %v460 = vand.u32 %v261, 4294901760
      %461 = vmatpush1.msra.mxu0 %v460
      %v462 = vand.u32 %v350, 4294901760
      %v463 = vsub.f32 %v350, %v462
      %v464 = vand.u32 %v463, 4294901760
      %v465 = vsub.f32 %v463, %v464
      %v466 = vand.u32 %v465, 4294901760
      %467 = vmatprep.mubr.f32.mxu0 %v466
      %v468 = vand.u32 %v342, 4294901760
      %v469 = vsub.f32 %v342, %v468
      %v470 = vand.u32 %v469, 4294901760
      %v471 = vsub.f32 %v469, %v470
      %v472 = vand.u32 %v471, 4294901760
      %473 = vmatmul.mubr.f32.gmra.mrb[0].mxu0 %v472
      %v474 = vpop.f32.mrb[0].mxu0
      %v475 = vadd.f32 %v331, %v474
      %v476 = vpop.f32.mrb[0].mxu0
      %477 = vdwg.mxu0
      %478 = vmatprep.subr.mxu0 0.0
      %v479 = vand.u32 %v230, 4294901760
      %v480 = vsub.f32 %v230, %v479
      %v481 = vand.u32 %v480, 4294901760
      %v482 = vsub.f32 %v480, %v481
      %v483 = vand.u32 %v482, 4294901760
      %484 = vmatpush1.msra.mxu0 %v483
      %485 = vmatprep.subr.mxu0 0.0
      %v486 = vand.u32 %v231, 4294901760
      %v487 = vsub.f32 %v231, %v486
      %v488 = vand.u32 %v487, 4294901760
      %v489 = vsub.f32 %v487, %v488
      %v490 = vand.u32 %v489, 4294901760
      %491 = vmatpush1.msra.mxu0 %v490
      %492 = vmatprep.subr.mxu0 0.0
      %v493 = vand.u32 %v232, 4294901760
      %v494 = vsub.f32 %v232, %v493
      %v495 = vand.u32 %v494, 4294901760
      %v496 = vsub.f32 %v494, %v495
      %v497 = vand.u32 %v496, 4294901760
      %498 = vmatpush1.msra.mxu0 %v497
      %499 = vmatprep.subr.mxu0 0.0
      %v500 = vand.u32 %v233, 4294901760
      %v501 = vsub.f32 %v233, %v500
      %v502 = vand.u32 %v501, 4294901760
      %v503 = vsub.f32 %v501, %v502
      %v504 = vand.u32 %v503, 4294901760
      %505 = vmatpush1.msra.mxu0 %v504
      %506 = vmatprep.subr.mxu0 0.0
      %v507 = vand.u32 %v234, 4294901760
      %v508 = vsub.f32 %v234, %v507
      %v509 = vand.u32 %v508, 4294901760
      %v510 = vsub.f32 %v508, %v509
      %v511 = vand.u32 %v510, 4294901760
      %512 = vmatpush1.msra.mxu0 %v511
      %513 = vmatprep.subr.mxu0 0.0
      %v514 = vand.u32 %v235, 4294901760
      %v515 = vsub.f32 %v235, %v514
      %v516 = vand.u32 %v515, 4294901760
      %v517 = vsub.f32 %v515, %v516
      %v518 = vand.u32 %v517, 4294901760
      %519 = vmatpush1.msra.mxu0 %v518
      %520 = vmatprep.subr.mxu0 0.0
      %v521 = vand.u32 %v236, 4294901760
      %v522 = vsub.f32 %v236, %v521
      %v523 = vand.u32 %v522, 4294901760
      %v524 = vsub.f32 %v522, %v523
      %v525 = vand.u32 %v524, 4294901760
      %526 = vmatpush1.msra.mxu0 %v525
      %527 = vmatprep.subr.mxu0 0.0
      %v528 = vand.u32 %v237, 4294901760
      %v529 = vsub.f32 %v237, %v528
      %v530 = vand.u32 %v529, 4294901760
      %v531 = vsub.f32 %v529, %v530
      %v532 = vand.u32 %v531, 4294901760
      %533 = vmatpush1.msra.mxu0 %v532
      %534 = vmatprep.subr.mxu0 0.0
      %v535 = vand.u32 %v238, 4294901760
      %v536 = vsub.f32 %v238, %v535
      %v537 = vand.u32 %v536, 4294901760
      %v538 = vsub.f32 %v536, %v537
      %v539 = vand.u32 %v538, 4294901760
      %540 = vmatpush1.msra.mxu0 %v539
      %541 = vmatprep.subr.mxu0 0.0
      %v542 = vand.u32 %v239, 4294901760
      %v543 = vsub.f32 %v239, %v542
      %v544 = vand.u32 %v543, 4294901760
      %v545 = vsub.f32 %v543, %v544
      %v546 = vand.u32 %v545, 4294901760
      %547 = vmatpush1.msra.mxu0 %v546
      %548 = vmatprep.subr.mxu0 0.0
      %v549 = vand.u32 %v240, 4294901760
      %v550 = vsub.f32 %v240, %v549
      %v551 = vand.u32 %v550, 4294901760
      %v552 = vsub.f32 %v550, %v551
      %v553 = vand.u32 %v552, 4294901760
      %554 = vmatpush1.msra.mxu0 %v553
      %555 = vmatprep.subr.mxu0 0.0
      %v556 = vand.u32 %v241, 4294901760
      %v557 = vsub.f32 %v241, %v556
      %v558 = vand.u32 %v557, 4294901760
      %v559 = vsub.f32 %v557, %v558
      %v560 = vand.u32 %v559, 4294901760
      %561 = vmatpush1.msra.mxu0 %v560
      %562 = vmatprep.subr.mxu0 0.0
      %v563 = vand.u32 %v242, 4294901760
      %v564 = vsub.f32 %v242, %v563
      %v565 = vand.u32 %v564, 4294901760
      %v566 = vsub.f32 %v564, %v565
      %v567 = vand.u32 %v566, 4294901760
      %568 = vmatpush1.msra.mxu0 %v567
      %569 = vmatprep.subr.mxu0 0.0
      %v570 = vand.u32 %v243, 4294901760
      %v571 = vsub.f32 %v243, %v570
      %v572 = vand.u32 %v571, 4294901760
      %v573 = vsub.f32 %v571, %v572
      %v574 = vand.u32 %v573, 4294901760
      %575 = vmatpush1.msra.mxu0 %v574
      %576 = vmatprep.subr.mxu0 0.0
      %v577 = vand.u32 %v244, 4294901760
      %v578 = vsub.f32 %v244, %v577
      %v579 = vand.u32 %v578, 4294901760
      %v580 = vsub.f32 %v578, %v579
      %v581 = vand.u32 %v580, 4294901760
      %582 = vmatpush1.msra.mxu0 %v581
      %583 = vmatprep.subr.mxu0 0.0
      %v584 = vand.u32 %v245, 4294901760
      %v585 = vsub.f32 %v245, %v584
      %v586 = vand.u32 %v585, 4294901760
      %v587 = vsub.f32 %v585, %v586
      %v588 = vand.u32 %v587, 4294901760
      %589 = vmatpush1.msra.mxu0 %v588
      %590 = vmatprep.subr.mxu0 0.0
      %v591 = vand.u32 %v246, 4294901760
      %v592 = vsub.f32 %v246, %v591
      %v593 = vand.u32 %v592, 4294901760
      %v594 = vsub.f32 %v592, %v593
      %v595 = vand.u32 %v594, 4294901760
      %596 = vmatpush1.msra.mxu0 %v595
      %597 = vmatprep.subr.mxu0 0.0
      %v598 = vand.u32 %v247, 4294901760
      %v599 = vsub.f32 %v247, %v598
      %v600 = vand.u32 %v599, 4294901760
      %v601 = vsub.f32 %v599, %v600
      %v602 = vand.u32 %v601, 4294901760
      %603 = vmatpush1.msra.mxu0 %v602
      %604 = vmatprep.subr.mxu0 0.0
      %v605 = vand.u32 %v248, 4294901760
      %v606 = vsub.f32 %v248, %v605
      %v607 = vand.u32 %v606, 4294901760
      %v608 = vsub.f32 %v606, %v607
      %v609 = vand.u32 %v608, 4294901760
      %610 = vmatpush1.msra.mxu0 %v609
      %611 = vmatprep.subr.mxu0 0.0
      %v612 = vand.u32 %v249, 4294901760
      %v613 = vsub.f32 %v249, %v612
      %v614 = vand.u32 %v613, 4294901760
      %v615 = vsub.f32 %v613, %v614
      %v616 = vand.u32 %v615, 4294901760
      %617 = vmatpush1.msra.mxu0 %v616
      %618 = vmatprep.subr.mxu0 0.0
      %v619 = vand.u32 %v250, 4294901760
      %v620 = vsub.f32 %v250, %v619
      %v621 = vand.u32 %v620, 4294901760
      %v622 = vsub.f32 %v620, %v621
      %v623 = vand.u32 %v622, 4294901760
      %624 = vmatpush1.msra.mxu0 %v623
      %625 = vmatprep.subr.mxu0 0.0
      %v626 = vand.u32 %v251, 4294901760
      %v627 = vsub.f32 %v251, %v626
      %v628 = vand.u32 %v627, 4294901760
      %v629 = vsub.f32 %v627, %v628
      %v630 = vand.u32 %v629, 4294901760
      %631 = vmatpush1.msra.mxu0 %v630
      %632 = vmatprep.subr.mxu0 0.0
      %v633 = vand.u32 %v252, 4294901760
      %v634 = vsub.f32 %v252, %v633
      %v635 = vand.u32 %v634, 4294901760
      %v636 = vsub.f32 %v634, %v635
      %v637 = vand.u32 %v636, 4294901760
      %638 = vmatpush1.msra.mxu0 %v637
      %639 = vmatprep.subr.mxu0 0.0
      %v640 = vand.u32 %v253, 4294901760
      %v641 = vsub.f32 %v253, %v640
      %v642 = vand.u32 %v641, 4294901760
      %v643 = vsub.f32 %v641, %v642
      %v644 = vand.u32 %v643, 4294901760
      %645 = vmatpush1.msra.mxu0 %v644
      %646 = vmatprep.subr.mxu0 0.0
      %v647 = vand.u32 %v254, 4294901760
      %v648 = vsub.f32 %v254, %v647
      %v649 = vand.u32 %v648, 4294901760
      %v650 = vsub.f32 %v648, %v649
      %v651 = vand.u32 %v650, 4294901760
      %652 = vmatpush1.msra.mxu0 %v651
      %653 = vmatprep.subr.mxu0 0.0
      %v654 = vand.u32 %v255, 4294901760
      %v655 = vsub.f32 %v255, %v654
      %v656 = vand.u32 %v655, 4294901760
      %v657 = vsub.f32 %v655, %v656
      %v658 = vand.u32 %v657, 4294901760
      %659 = vmatpush1.msra.mxu0 %v658
      %660 = vmatprep.subr.mxu0 0.0
      %v661 = vand.u32 %v256, 4294901760
      %v662 = vsub.f32 %v256, %v661
      %v663 = vand.u32 %v662, 4294901760
      %v664 = vsub.f32 %v662, %v663
      %v665 = vand.u32 %v664, 4294901760
      %666 = vmatpush1.msra.mxu0 %v665
      %667 = vmatprep.subr.mxu0 0.0
      %v668 = vand.u32 %v257, 4294901760
      %v669 = vsub.f32 %v257, %v668
      %v670 = vand.u32 %v669, 4294901760
      %v671 = vsub.f32 %v669, %v670
      %v672 = vand.u32 %v671, 4294901760
      %673 = vmatpush1.msra.mxu0 %v672
      %674 = vmatprep.subr.mxu0 0.0
      %v675 = vand.u32 %v258, 4294901760
      %v676 = vsub.f32 %v258, %v675
      %v677 = vand.u32 %v676, 4294901760
      %v678 = vsub.f32 %v676, %v677
      %v679 = vand.u32 %v678, 4294901760
      %680 = vmatpush1.msra.mxu0 %v679
      %681 = vmatprep.subr.mxu0 0.0
      %v682 = vand.u32 %v259, 4294901760
      %v683 = vsub.f32 %v259, %v682
      %v684 = vand.u32 %v683, 4294901760
      %v685 = vsub.f32 %v683, %v684
      %v686 = vand.u32 %v685, 4294901760
      %687 = vmatpush1.msra.mxu0 %v686
      %688 = vmatprep.subr.mxu0 0.0
      %v689 = vand.u32 %v260, 4294901760
      %v690 = vsub.f32 %v260, %v689
      %v691 = vand.u32 %v690, 4294901760
      %v692 = vsub.f32 %v690, %v691
      %v693 = vand.u32 %v692, 4294901760
      %694 = vmatpush1.msra.mxu0 %v693
      %695 = vmatprep.subr.mxu0 0.0
      %v696 = vand.u32 %v261, 4294901760
      %v697 = vsub.f32 %v261, %v696
      %v698 = vand.u32 %v697, 4294901760
      %v699 = vsub.f32 %v697, %v698
      %v700 = vand.u32 %v699, 4294901760
      %701 = vmatpush1.msra.mxu0 %v700
      %v702 = vand.u32 %v350, 4294901760
      %703 = vmatprep.mubr.f32.mxu0 %v702
      %v704 = vand.u32 %v342, 4294901760
      %705 = vmatmul.mubr.f32.gmra.mrb[0].mxu0 %v704
      %v706 = vpop.f32.mrb[0].mxu0
      %v707 = vadd.f32 %v475, %v706
      %v708 = vpop.f32.mrb[0].mxu0
      %709 = vdwg.mxu0
      %710 = vmatprep.subr.mxu0 0.0
      %v711 = vand.u32 %v230, 4294901760
      %v712 = vsub.f32 %v230, %v711
      %713 = vmatpush1.msra.mxu0 %v712
      %714 = vmatprep.subr.mxu0 0.0
      %v715 = vand.u32 %v231, 4294901760
      %v716 = vsub.f32 %v231, %v715
      %717 = vmatpush1.msra.mxu0 %v716
      %718 = vmatprep.subr.mxu0 0.0
      %v719 = vand.u32 %v232, 4294901760
      %v720 = vsub.f32 %v232, %v719
      %721 = vmatpush1.msra.mxu0 %v720
      %722 = vmatprep.subr.mxu0 0.0
      %v723 = vand.u32 %v233, 4294901760
      %v724 = vsub.f32 %v233, %v723
      %725 = vmatpush1.msra.mxu0 %v724
      %726 = vmatprep.subr.mxu0 0.0
      %v727 = vand.u32 %v234, 4294901760
      %v728 = vsub.f32 %v234, %v727
      %729 = vmatpush1.msra.mxu0 %v728
      %730 = vmatprep.subr.mxu0 0.0
      %v731 = vand.u32 %v235, 4294901760
      %v732 = vsub.f32 %v235, %v731
      %733 = vmatpush1.msra.mxu0 %v732
      %734 = vmatprep.subr.mxu0 0.0
      %v735 = vand.u32 %v236, 4294901760
      %v736 = vsub.f32 %v236, %v735
      %737 = vmatpush1.msra.mxu0 %v736
      %738 = vmatprep.subr.mxu0 0.0
      %v739 = vand.u32 %v237, 4294901760
      %v740 = vsub.f32 %v237, %v739
      %741 = vmatpush1.msra.mxu0 %v740
      %742 = vmatprep.subr.mxu0 0.0
      %v743 = vand.u32 %v238, 4294901760
      %v744 = vsub.f32 %v238, %v743
      %745 = vmatpush1.msra.mxu0 %v744
      %746 = vmatprep.subr.mxu0 0.0
      %v747 = vand.u32 %v239, 4294901760
      %v748 = vsub.f32 %v239, %v747
      %749 = vmatpush1.msra.mxu0 %v748
      %750 = vmatprep.subr.mxu0 0.0
      %v751 = vand.u32 %v240, 4294901760
      %v752 = vsub.f32 %v240, %v751
      %753 = vmatpush1.msra.mxu0 %v752
      %754 = vmatprep.subr.mxu0 0.0
      %v755 = vand.u32 %v241, 4294901760
      %v756 = vsub.f32 %v241, %v755
      %757 = vmatpush1.msra.mxu0 %v756
      %758 = vmatprep.subr.mxu0 0.0
      %v759 = vand.u32 %v242, 4294901760
      %v760 = vsub.f32 %v242, %v759
      %761 = vmatpush1.msra.mxu0 %v760
      %762 = vmatprep.subr.mxu0 0.0
      %v763 = vand.u32 %v243, 4294901760
      %v764 = vsub.f32 %v243, %v763
      %765 = vmatpush1.msra.mxu0 %v764
      %766 = vmatprep.subr.mxu0 0.0
      %v767 = vand.u32 %v244, 4294901760
      %v768 = vsub.f32 %v244, %v767
      %769 = vmatpush1.msra.mxu0 %v768
      %770 = vmatprep.subr.mxu0 0.0
      %v771 = vand.u32 %v245, 4294901760
      %v772 = vsub.f32 %v245, %v771
      %773 = vmatpush1.msra.mxu0 %v772
      %774 = vmatprep.subr.mxu0 0.0
      %v775 = vand.u32 %v246, 4294901760
      %v776 = vsub.f32 %v246, %v775
      %777 = vmatpush1.msra.mxu0 %v776
      %778 = vmatprep.subr.mxu0 0.0
      %v779 = vand.u32 %v247, 4294901760
      %v780 = vsub.f32 %v247, %v779
      %781 = vmatpush1.msra.mxu0 %v780
      %782 = vmatprep.subr.mxu0 0.0
      %v783 = vand.u32 %v248, 4294901760
      %v784 = vsub.f32 %v248, %v783
      %785 = vmatpush1.msra.mxu0 %v784
      %786 = vmatprep.subr.mxu0 0.0
      %v787 = vand.u32 %v249, 4294901760
      %v788 = vsub.f32 %v249, %v787
      %789 = vmatpush1.msra.mxu0 %v788
      %790 = vmatprep.subr.mxu0 0.0
      %v791 = vand.u32 %v250, 4294901760
      %v792 = vsub.f32 %v250, %v791
      %793 = vmatpush1.msra.mxu0 %v792
      %794 = vmatprep.subr.mxu0 0.0
      %v795 = vand.u32 %v251, 4294901760
      %v796 = vsub.f32 %v251, %v795
      %797 = vmatpush1.msra.mxu0 %v796
      %798 = vmatprep.subr.mxu0 0.0
      %v799 = vand.u32 %v252, 4294901760
      %v800 = vsub.f32 %v252, %v799
      %801 = vmatpush1.msra.mxu0 %v800
      %802 = vmatprep.subr.mxu0 0.0
      %v803 = vand.u32 %v253, 4294901760
      %v804 = vsub.f32 %v253, %v803
      %805 = vmatpush1.msra.mxu0 %v804
      %806 = vmatprep.subr.mxu0 0.0
      %v807 = vand.u32 %v254, 4294901760
      %v808 = vsub.f32 %v254, %v807
      %809 = vmatpush1.msra.mxu0 %v808
      %810 = vmatprep.subr.mxu0 0.0
      %v811 = vand.u32 %v255, 4294901760
      %v812 = vsub.f32 %v255, %v811
      %813 = vmatpush1.msra.mxu0 %v812
      %814 = vmatprep.subr.mxu0 0.0
      %v815 = vand.u32 %v256, 4294901760
      %v816 = vsub.f32 %v256, %v815
      %817 = vmatpush1.msra.mxu0 %v816
      %818 = vmatprep.subr.mxu0 0.0
      %v819 = vand.u32 %v257, 4294901760
      %v820 = vsub.f32 %v257, %v819
      %821 = vmatpush1.msra.mxu0 %v820
      %822 = vmatprep.subr.mxu0 0.0
      %v823 = vand.u32 %v258, 4294901760
      %v824 = vsub.f32 %v258, %v823
      %825 = vmatpush1.msra.mxu0 %v824
      %826 = vmatprep.subr.mxu0 0.0
      %v827 = vand.u32 %v259, 4294901760
      %v828 = vsub.f32 %v259, %v827
      %829 = vmatpush1.msra.mxu0 %v828
      %830 = vmatprep.subr.mxu0 0.0
      %v831 = vand.u32 %v260, 4294901760
      %v832 = vsub.f32 %v260, %v831
      %833 = vmatpush1.msra.mxu0 %v832
      %834 = vmatprep.subr.mxu0 0.0
      %v835 = vand.u32 %v261, 4294901760
      %v836 = vsub.f32 %v261, %v835
      %837 = vmatpush1.msra.mxu0 %v836
      %v838 = vand.u32 %v350, 4294901760
      %v839 = vsub.f32 %v350, %v838
      %840 = vmatprep.mubr.f32.mxu0 %v839
      %v841 = vand.u32 %v342, 4294901760
      %v842 = vsub.f32 %v342, %v841
      %843 = vmatmul.mubr.f32.gmra.mrb[0].mxu0 %v842
      %v844 = vpop.f32.mrb[0].mxu0
      %v845 = vadd.f32 %v707, %v844
      %v846 = vpop.f32.mrb[0].mxu0
      %847 = vdwg.mxu0
      %848 = vmatprep.subr.mxu0 0.0
      %v849 = vand.u32 %v230, 4294901760
      %850 = vmatpush1.msra.mxu0 %v849
      %851 = vmatprep.subr.mxu0 0.0
      %v852 = vand.u32 %v231, 4294901760
      %853 = vmatpush1.msra.mxu0 %v852
      %854 = vmatprep.subr.mxu0 0.0
      %v855 = vand.u32 %v232, 4294901760
      %856 = vmatpush1.msra.mxu0 %v855
      %857 = vmatprep.subr.mxu0 0.0
      %v858 = vand.u32 %v233, 4294901760
      %859 = vmatpush1.msra.mxu0 %v858
      %860 = vmatprep.subr.mxu0 0.0
      %v861 = vand.u32 %v234, 4294901760
      %862 = vmatpush1.msra.mxu0 %v861
      %863 = vmatprep.subr.mxu0 0.0
      %v864 = vand.u32 %v235, 4294901760
      %865 = vmatpush1.msra.mxu0 %v864
      %866 = vmatprep.subr.mxu0 0.0
      %v867 = vand.u32 %v236, 4294901760
      %868 = vmatpush1.msra.mxu0 %v867
      %869 = vmatprep.subr.mxu0 0.0
      %v870 = vand.u32 %v237, 4294901760
      %871 = vmatpush1.msra.mxu0 %v870
      %872 = vmatprep.subr.mxu0 0.0
      %v873 = vand.u32 %v238, 4294901760
      %874 = vmatpush1.msra.mxu0 %v873
      %875 = vmatprep.subr.mxu0 0.0
      %v876 = vand.u32 %v239, 4294901760
      %877 = vmatpush1.msra.mxu0 %v876
      %878 = vmatprep.subr.mxu0 0.0
      %v879 = vand.u32 %v240, 4294901760
      %880 = vmatpush1.msra.mxu0 %v879
      %881 = vmatprep.subr.mxu0 0.0
      %v882 = vand.u32 %v241, 4294901760
      %883 = vmatpush1.msra.mxu0 %v882
      %884 = vmatprep.subr.mxu0 0.0
      %v885 = vand.u32 %v242, 4294901760
      %886 = vmatpush1.msra.mxu0 %v885
      %887 = vmatprep.subr.mxu0 0.0
      %v888 = vand.u32 %v243, 4294901760
      %889 = vmatpush1.msra.mxu0 %v888
      %890 = vmatprep.subr.mxu0 0.0
      %v891 = vand.u32 %v244, 4294901760
      %892 = vmatpush1.msra.mxu0 %v891
      %893 = vmatprep.subr.mxu0 0.0
      %v894 = vand.u32 %v245, 4294901760
      %895 = vmatpush1.msra.mxu0 %v894
      %896 = vmatprep.subr.mxu0 0.0
      %v897 = vand.u32 %v246, 4294901760
      %898 = vmatpush1.msra.mxu0 %v897
      %899 = vmatprep.subr.mxu0 0.0
      %v900 = vand.u32 %v247, 4294901760
      %901 = vmatpush1.msra.mxu0 %v900
      %902 = vmatprep.subr.mxu0 0.0
      %v903 = vand.u32 %v248, 4294901760
      %904 = vmatpush1.msra.mxu0 %v903
      %905 = vmatprep.subr.mxu0 0.0
      %v906 = vand.u32 %v249, 4294901760
      %907 = vmatpush1.msra.mxu0 %v906
      %908 = vmatprep.subr.mxu0 0.0
      %v909 = vand.u32 %v250, 4294901760
      %910 = vmatpush1.msra.mxu0 %v909
      %911 = vmatprep.subr.mxu0 0.0
      %v912 = vand.u32 %v251, 4294901760
      %913 = vmatpush1.msra.mxu0 %v912
      %914 = vmatprep.subr.mxu0 0.0
      %v915 = vand.u32 %v252, 4294901760
      %916 = vmatpush1.msra.mxu0 %v915
      %917 = vmatprep.subr.mxu0 0.0
      %v918 = vand.u32 %v253, 4294901760
      %919 = vmatpush1.msra.mxu0 %v918
      %920 = vmatprep.subr.mxu0 0.0
      %v921 = vand.u32 %v254, 4294901760
      %922 = vmatpush1.msra.mxu0 %v921
      %923 = vmatprep.subr.mxu0 0.0
      %v924 = vand.u32 %v255, 4294901760
      %925 = vmatpush1.msra.mxu0 %v924
      %926 = vmatprep.subr.mxu0 0.0
      %v927 = vand.u32 %v256, 4294901760
      %928 = vmatpush1.msra.mxu0 %v927
      %929 = vmatprep.subr.mxu0 0.0
      %v930 = vand.u32 %v257, 4294901760
      %931 = vmatpush1.msra.mxu0 %v930
      %932 = vmatprep.subr.mxu0 0.0
      %v933 = vand.u32 %v258, 4294901760
      %934 = vmatpush1.msra.mxu0 %v933
      %935 = vmatprep.subr.mxu0 0.0
      %v936 = vand.u32 %v259, 4294901760
      %937 = vmatpush1.msra.mxu0 %v936
      %938 = vmatprep.subr.mxu0 0.0
      %v939 = vand.u32 %v260, 4294901760
      %940 = vmatpush1.msra.mxu0 %v939
      %941 = vmatprep.subr.mxu0 0.0
      %v942 = vand.u32 %v261, 4294901760
      %943 = vmatpush1.msra.mxu0 %v942
      %v944 = vand.u32 %v350, 4294901760
      %v945 = vsub.f32 %v350, %v944
      %v946 = vand.u32 %v945, 4294901760
      %947 = vmatprep.mubr.f32.mxu0 %v946
      %v948 = vand.u32 %v342, 4294901760
      %v949 = vsub.f32 %v342, %v948
      %v950 = vand.u32 %v949, 4294901760
      %951 = vmatmul.mubr.f32.gmra.mrb[0].mxu0 %v950
      %v952 = vpop.f32.mrb[0].mxu0
      %v953 = vadd.f32 %v845, %v952
      %v954 = vpop.f32.mrb[0].mxu0
      %955 = vdwg.mxu0
      %956 = vmatprep.subr.mxu0 0.0
      %v957 = vand.u32 %v230, 4294901760
      %v958 = vsub.f32 %v230, %v957
      %v959 = vand.u32 %v958, 4294901760
      %960 = vmatpush1.msra.mxu0 %v959
      %961 = vmatprep.subr.mxu0 0.0
      %v962 = vand.u32 %v231, 4294901760
      %v963 = vsub.f32 %v231, %v962
      %v964 = vand.u32 %v963, 4294901760
      %965 = vmatpush1.msra.mxu0 %v964
      %966 = vmatprep.subr.mxu0 0.0
      %v967 = vand.u32 %v232, 4294901760
      %v968 = vsub.f32 %v232, %v967
      %v969 = vand.u32 %v968, 4294901760
      %970 = vmatpush1.msra.mxu0 %v969
      %971 = vmatprep.subr.mxu0 0.0
      %v972 = vand.u32 %v233, 4294901760
      %v973 = vsub.f32 %v233, %v972
      %v974 = vand.u32 %v973, 4294901760
      %975 = vmatpush1.msra.mxu0 %v974
      %976 = vmatprep.subr.mxu0 0.0
      %v977 = vand.u32 %v234, 4294901760
      %v978 = vsub.f32 %v234, %v977
      %v979 = vand.u32 %v978, 4294901760
      %980 = vmatpush1.msra.mxu0 %v979
      %981 = vmatprep.subr.mxu0 0.0
      %v982 = vand.u32 %v235, 4294901760
      %v983 = vsub.f32 %v235, %v982
      %v984 = vand.u32 %v983, 4294901760
      %985 = vmatpush1.msra.mxu0 %v984
      %986 = vmatprep.subr.mxu0 0.0
      %v987 = vand.u32 %v236, 4294901760
      %v988 = vsub.f32 %v236, %v987
      %v989 = vand.u32 %v988, 4294901760
      %990 = vmatpush1.msra.mxu0 %v989
      %991 = vmatprep.subr.mxu0 0.0
      %v992 = vand.u32 %v237, 4294901760
      %v993 = vsub.f32 %v237, %v992
      %v994 = vand.u32 %v993, 4294901760
      %995 = vmatpush1.msra.mxu0 %v994
      %996 = vmatprep.subr.mxu0 0.0
      %v997 = vand.u32 %v238, 4294901760
      %v998 = vsub.f32 %v238, %v997
      %v999 = vand.u32 %v998, 4294901760
      %1000 = vmatpush1.msra.mxu0 %v999
      %1001 = vmatprep.subr.mxu0 0.0
      %v1002 = vand.u32 %v239, 4294901760
      %v1003 = vsub.f32 %v239, %v1002
      %v1004 = vand.u32 %v1003, 4294901760
      %1005 = vmatpush1.msra.mxu0 %v1004
      %1006 = vmatprep.subr.mxu0 0.0
      %v1007 = vand.u32 %v240, 4294901760
      %v1008 = vsub.f32 %v240, %v1007
      %v1009 = vand.u32 %v1008, 4294901760
      %1010 = vmatpush1.msra.mxu0 %v1009
      %1011 = vmatprep.subr.mxu0 0.0
      %v1012 = vand.u32 %v241, 4294901760
      %v1013 = vsub.f32 %v241, %v1012
      %v1014 = vand.u32 %v1013, 4294901760
      %1015 = vmatpush1.msra.mxu0 %v1014
      %1016 = vmatprep.subr.mxu0 0.0
      %v1017 = vand.u32 %v242, 4294901760
      %v1018 = vsub.f32 %v242, %v1017
      %v1019 = vand.u32 %v1018, 4294901760
      %1020 = vmatpush1.msra.mxu0 %v1019
      %1021 = vmatprep.subr.mxu0 0.0
      %v1022 = vand.u32 %v243, 4294901760
      %v1023 = vsub.f32 %v243, %v1022
      %v1024 = vand.u32 %v1023, 4294901760
      %1025 = vmatpush1.msra.mxu0 %v1024
      %1026 = vmatprep.subr.mxu0 0.0
      %v1027 = vand.u32 %v244, 4294901760
      %v1028 = vsub.f32 %v244, %v1027
      %v1029 = vand.u32 %v1028, 4294901760
      %1030 = vmatpush1.msra.mxu0 %v1029
      %1031 = vmatprep.subr.mxu0 0.0
      %v1032 = vand.u32 %v245, 4294901760
      %v1033 = vsub.f32 %v245, %v1032
      %v1034 = vand.u32 %v1033, 4294901760
      %1035 = vmatpush1.msra.mxu0 %v1034
      %1036 = vmatprep.subr.mxu0 0.0
      %v1037 = vand.u32 %v246, 4294901760
      %v1038 = vsub.f32 %v246, %v1037
      %v1039 = vand.u32 %v1038, 4294901760
      %1040 = vmatpush1.msra.mxu0 %v1039
      %1041 = vmatprep.subr.mxu0 0.0
      %v1042 = vand.u32 %v247, 4294901760
      %v1043 = vsub.f32 %v247, %v1042
      %v1044 = vand.u32 %v1043, 4294901760
      %1045 = vmatpush1.msra.mxu0 %v1044
      %1046 = vmatprep.subr.mxu0 0.0
      %v1047 = vand.u32 %v248, 4294901760
      %v1048 = vsub.f32 %v248, %v1047
      %v1049 = vand.u32 %v1048, 4294901760
      %1050 = vmatpush1.msra.mxu0 %v1049
      %1051 = vmatprep.subr.mxu0 0.0
      %v1052 = vand.u32 %v249, 4294901760
      %v1053 = vsub.f32 %v249, %v1052
      %v1054 = vand.u32 %v1053, 4294901760
      %1055 = vmatpush1.msra.mxu0 %v1054
      %1056 = vmatprep.subr.mxu0 0.0
      %v1057 = vand.u32 %v250, 4294901760
      %v1058 = vsub.f32 %v250, %v1057
      %v1059 = vand.u32 %v1058, 4294901760
      %1060 = vmatpush1.msra.mxu0 %v1059
      %1061 = vmatprep.subr.mxu0 0.0
      %v1062 = vand.u32 %v251, 4294901760
      %v1063 = vsub.f32 %v251, %v1062
      %v1064 = vand.u32 %v1063, 4294901760
      %1065 = vmatpush1.msra.mxu0 %v1064
      %1066 = vmatprep.subr.mxu0 0.0
      %v1067 = vand.u32 %v252, 4294901760
      %v1068 = vsub.f32 %v252, %v1067
      %v1069 = vand.u32 %v1068, 4294901760
      %1070 = vmatpush1.msra.mxu0 %v1069
      %1071 = vmatprep.subr.mxu0 0.0
      %v1072 = vand.u32 %v253, 4294901760
      %v1073 = vsub.f32 %v253, %v1072
      %v1074 = vand.u32 %v1073, 4294901760
      %1075 = vmatpush1.msra.mxu0 %v1074
      %1076 = vmatprep.subr.mxu0 0.0
      %v1077 = vand.u32 %v254, 4294901760
      %v1078 = vsub.f32 %v254, %v1077
      %v1079 = vand.u32 %v1078, 4294901760
      %1080 = vmatpush1.msra.mxu0 %v1079
      %1081 = vmatprep.subr.mxu0 0.0
      %v1082 = vand.u32 %v255, 4294901760
      %v1083 = vsub.f32 %v255, %v1082
      %v1084 = vand.u32 %v1083, 4294901760
      %1085 = vmatpush1.msra.mxu0 %v1084
      %1086 = vmatprep.subr.mxu0 0.0
      %v1087 = vand.u32 %v256, 4294901760
      %v1088 = vsub.f32 %v256, %v1087
      %v1089 = vand.u32 %v1088, 4294901760
      %1090 = vmatpush1.msra.mxu0 %v1089
      %1091 = vmatprep.subr.mxu0 0.0
      %v1092 = vand.u32 %v257, 4294901760
      %v1093 = vsub.f32 %v257, %v1092
      %v1094 = vand.u32 %v1093, 4294901760
      %1095 = vmatpush1.msra.mxu0 %v1094
      %1096 = vmatprep.subr.mxu0 0.0
      %v1097 = vand.u32 %v258, 4294901760
      %v1098 = vsub.f32 %v258, %v1097
      %v1099 = vand.u32 %v1098, 4294901760
      %1100 = vmatpush1.msra.mxu0 %v1099
      %1101 = vmatprep.subr.mxu0 0.0
      %v1102 = vand.u32 %v259, 4294901760
      %v1103 = vsub.f32 %v259, %v1102
      %v1104 = vand.u32 %v1103, 4294901760
      %1105 = vmatpush1.msra.mxu0 %v1104
      %1106 = vmatprep.subr.mxu0 0.0
      %v1107 = vand.u32 %v260, 4294901760
      %v1108 = vsub.f32 %v260, %v1107
      %v1109 = vand.u32 %v1108, 4294901760
      %1110 = vmatpush1.msra.mxu0 %v1109
      %1111 = vmatprep.subr.mxu0 0.0
      %v1112 = vand.u32 %v261, 4294901760
      %v1113 = vsub.f32 %v261, %v1112
      %v1114 = vand.u32 %v1113, 4294901760
      %1115 = vmatpush1.msra.mxu0 %v1114
      %v1116 = vand.u32 %v350, 4294901760
      %1117 = vmatprep.mubr.f32.mxu0 %v1116
      %v1118 = vand.u32 %v342, 4294901760
      %1119 = vmatmul.mubr.f32.gmra.mrb[0].mxu0 %v1118
      %v1120 = vpop.f32.mrb[0].mxu0
      %v1121 = vadd.f32 %v953, %v1120
      %v1122 = vpop.f32.mrb[0].mxu0
      %1123 = vdwg.mxu0
      %1124 = vmatprep.subr.mxu0 0.0
      %v1125 = vand.u32 %v230, 4294901760
      %1126 = vmatpush1.msra.mxu0 %v1125
      %1127 = vmatprep.subr.mxu0 0.0
      %v1128 = vand.u32 %v231, 4294901760
      %1129 = vmatpush1.msra.mxu0 %v1128
      %1130 = vmatprep.subr.mxu0 0.0
      %v1131 = vand.u32 %v232, 4294901760
      %1132 = vmatpush1.msra.mxu0 %v1131
      %1133 = vmatprep.subr.mxu0 0.0
      %v1134 = vand.u32 %v233, 4294901760
      %1135 = vmatpush1.msra.mxu0 %v1134
      %1136 = vmatprep.subr.mxu0 0.0
      %v1137 = vand.u32 %v234, 4294901760
      %1138 = vmatpush1.msra.mxu0 %v1137
      %1139 = vmatprep.subr.mxu0 0.0
      %v1140 = vand.u32 %v235, 4294901760
      %1141 = vmatpush1.msra.mxu0 %v1140
      %1142 = vmatprep.subr.mxu0 0.0
      %v1143 = vand.u32 %v236, 4294901760
      %1144 = vmatpush1.msra.mxu0 %v1143
      %1145 = vmatprep.subr.mxu0 0.0
      %v1146 = vand.u32 %v237, 4294901760
      %1147 = vmatpush1.msra.mxu0 %v1146
      %1148 = vmatprep.subr.mxu0 0.0
      %v1149 = vand.u32 %v238, 4294901760
      %1150 = vmatpush1.msra.mxu0 %v1149
      %1151 = vmatprep.subr.mxu0 0.0
      %v1152 = vand.u32 %v239, 4294901760
      %1153 = vmatpush1.msra.mxu0 %v1152
      %1154 = vmatprep.subr.mxu0 0.0
      %v1155 = vand.u32 %v240, 4294901760
      %1156 = vmatpush1.msra.mxu0 %v1155
      %1157 = vmatprep.subr.mxu0 0.0
      %v1158 = vand.u32 %v241, 4294901760
      %1159 = vmatpush1.msra.mxu0 %v1158
      %1160 = vmatprep.subr.mxu0 0.0
      %v1161 = vand.u32 %v242, 4294901760
      %1162 = vmatpush1.msra.mxu0 %v1161
      %1163 = vmatprep.subr.mxu0 0.0
      %v1164 = vand.u32 %v243, 4294901760
      %1165 = vmatpush1.msra.mxu0 %v1164
      %1166 = vmatprep.subr.mxu0 0.0
      %v1167 = vand.u32 %v244, 4294901760
      %1168 = vmatpush1.msra.mxu0 %v1167
      %1169 = vmatprep.subr.mxu0 0.0
      %v1170 = vand.u32 %v245, 4294901760
      %1171 = vmatpush1.msra.mxu0 %v1170
      %1172 = vmatprep.subr.mxu0 0.0
      %v1173 = vand.u32 %v246, 4294901760
      %1174 = vmatpush1.msra.mxu0 %v1173
      %1175 = vmatprep.subr.mxu0 0.0
      %v1176 = vand.u32 %v247, 4294901760
      %1177 = vmatpush1.msra.mxu0 %v1176
      %1178 = vmatprep.subr.mxu0 0.0
      %v1179 = vand.u32 %v248, 4294901760
      %1180 = vmatpush1.msra.mxu0 %v1179
      %1181 = vmatprep.subr.mxu0 0.0
      %v1182 = vand.u32 %v249, 4294901760
      %1183 = vmatpush1.msra.mxu0 %v1182
      %1184 = vmatprep.subr.mxu0 0.0
      %v1185 = vand.u32 %v250, 4294901760
      %1186 = vmatpush1.msra.mxu0 %v1185
      %1187 = vmatprep.subr.mxu0 0.0
      %v1188 = vand.u32 %v251, 4294901760
      %1189 = vmatpush1.msra.mxu0 %v1188
      %1190 = vmatprep.subr.mxu0 0.0
      %v1191 = vand.u32 %v252, 4294901760
      %1192 = vmatpush1.msra.mxu0 %v1191
      %1193 = vmatprep.subr.mxu0 0.0
      %v1194 = vand.u32 %v253, 4294901760
      %1195 = vmatpush1.msra.mxu0 %v1194
      %1196 = vmatprep.subr.mxu0 0.0
      %v1197 = vand.u32 %v254, 4294901760
      %1198 = vmatpush1.msra.mxu0 %v1197
      %1199 = vmatprep.subr.mxu0 0.0
      %v1200 = vand.u32 %v255, 4294901760
      %1201 = vmatpush1.msra.mxu0 %v1200
      %1202 = vmatprep.subr.mxu0 0.0
      %v1203 = vand.u32 %v256, 4294901760
      %1204 = vmatpush1.msra.mxu0 %v1203
      %1205 = vmatprep.subr.mxu0 0.0
      %v1206 = vand.u32 %v257, 4294901760
      %1207 = vmatpush1.msra.mxu0 %v1206
      %1208 = vmatprep.subr.mxu0 0.0
      %v1209 = vand.u32 %v258, 4294901760
      %1210 = vmatpush1.msra.mxu0 %v1209
      %1211 = vmatprep.subr.mxu0 0.0
      %v1212 = vand.u32 %v259, 4294901760
      %1213 = vmatpush1.msra.mxu0 %v1212
      %1214 = vmatprep.subr.mxu0 0.0
      %v1215 = vand.u32 %v260, 4294901760
      %1216 = vmatpush1.msra.mxu0 %v1215
      %1217 = vmatprep.subr.mxu0 0.0
      %v1218 = vand.u32 %v261, 4294901760
      %1219 = vmatpush1.msra.mxu0 %v1218
      %v1220 = vand.u32 %v350, 4294901760
      %1221 = vmatprep.mubr.f32.mxu0 %v1220
      %v1222 = vand.u32 %v342, 4294901760
      %1223 = vmatmul.mubr.f32.gmra.mrb[0].mxu0 %v1222
      %v1224 = vpop.f32.mrb[0].mxu0
      %v1225 = vadd.f32 %v1121, %v1224
      %v1226 = vpop.f32.mrb[0].mxu0
      %1227 = vdwg.mxu0
      %1228 = vmatprep.subr.mxu0 0.0
      %v1229 = vand.u32 %v262, 4294901760
      %1230 = vmatpush1.msra.mxu0 %v1229
      %1231 = vmatprep.subr.mxu0 0.0
      %v1232 = vand.u32 %v263, 4294901760
      %1233 = vmatpush1.msra.mxu0 %v1232
      %1234 = vmatprep.subr.mxu0 0.0
      %v1235 = vand.u32 %v264, 4294901760
      %1236 = vmatpush1.msra.mxu0 %v1235
      %1237 = vmatprep.subr.mxu0 0.0
      %v1238 = vand.u32 %v265, 4294901760
      %1239 = vmatpush1.msra.mxu0 %v1238
      %1240 = vmatprep.subr.mxu0 0.0
      %v1241 = vand.u32 %v266, 4294901760
      %1242 = vmatpush1.msra.mxu0 %v1241
      %1243 = vmatprep.subr.mxu0 0.0
      %v1244 = vand.u32 %v267, 4294901760
      %1245 = vmatpush1.msra.mxu0 %v1244
      %1246 = vmatprep.subr.mxu0 0.0
      %v1247 = vand.u32 %v268, 4294901760
      %1248 = vmatpush1.msra.mxu0 %v1247
      %1249 = vmatprep.subr.mxu0 0.0
      %v1250 = vand.u32 %v269, 4294901760
      %1251 = vmatpush1.msra.mxu0 %v1250
      %1252 = vmatprep.subr.mxu0 0.0
      %v1253 = vand.u32 %v270, 4294901760
      %1254 = vmatpush1.msra.mxu0 %v1253
      %1255 = vmatprep.subr.mxu0 0.0
      %v1256 = vand.u32 %v271, 4294901760
      %1257 = vmatpush1.msra.mxu0 %v1256
      %1258 = vmatprep.subr.mxu0 0.0
      %v1259 = vand.u32 %v272, 4294901760
      %1260 = vmatpush1.msra.mxu0 %v1259
      %1261 = vmatprep.subr.mxu0 0.0
      %v1262 = vand.u32 %v273, 4294901760
      %1263 = vmatpush1.msra.mxu0 %v1262
      %1264 = vmatprep.subr.mxu0 0.0
      %v1265 = vand.u32 %v274, 4294901760
      %1266 = vmatpush1.msra.mxu0 %v1265
      %1267 = vmatprep.subr.mxu0 0.0
      %v1268 = vand.u32 %v275, 4294901760
      %1269 = vmatpush1.msra.mxu0 %v1268
      %1270 = vmatprep.subr.mxu0 0.0
      %v1271 = vand.u32 %v276, 4294901760
      %1272 = vmatpush1.msra.mxu0 %v1271
      %1273 = vmatprep.subr.mxu0 0.0
      %v1274 = vand.u32 %v277, 4294901760
      %1275 = vmatpush1.msra.mxu0 %v1274
      %1276 = vmatprep.subr.mxu0 0.0
      %v1277 = vand.u32 %v278, 4294901760
      %1278 = vmatpush1.msra.mxu0 %v1277
      %1279 = vmatprep.subr.mxu0 0.0
      %v1280 = vand.u32 %v279, 4294901760
      %1281 = vmatpush1.msra.mxu0 %v1280
      %1282 = vmatprep.subr.mxu0 0.0
      %v1283 = vand.u32 %v280, 4294901760
      %1284 = vmatpush1.msra.mxu0 %v1283
      %1285 = vmatprep.subr.mxu0 0.0
      %v1286 = vand.u32 %v281, 4294901760
      %1287 = vmatpush1.msra.mxu0 %v1286
      %1288 = vmatprep.subr.mxu0 0.0
      %v1289 = vand.u32 %v282, 4294901760
      %1290 = vmatpush1.msra.mxu0 %v1289
      %1291 = vmatprep.subr.mxu0 0.0
      %v1292 = vand.u32 %v283, 4294901760
      %1293 = vmatpush1.msra.mxu0 %v1292
      %1294 = vmatprep.subr.mxu0 0.0
      %v1295 = vand.u32 %v284, 4294901760
      %1296 = vmatpush1.msra.mxu0 %v1295
      %1297 = vmatprep.subr.mxu0 0.0
      %v1298 = vand.u32 %v285, 4294901760
      %1299 = vmatpush1.msra.mxu0 %v1298
      %1300 = vmatprep.subr.mxu0 0.0
      %v1301 = vand.u32 %v286, 4294901760
      %1302 = vmatpush1.msra.mxu0 %v1301
      %1303 = vmatprep.subr.mxu0 0.0
      %v1304 = vand.u32 %v287, 4294901760
      %1305 = vmatpush1.msra.mxu0 %v1304
      %1306 = vmatprep.subr.mxu0 0.0
      %v1307 = vand.u32 %v288, 4294901760
      %1308 = vmatpush1.msra.mxu0 %v1307
      %1309 = vmatprep.subr.mxu0 0.0
      %v1310 = vand.u32 %v289, 4294901760
      %1311 = vmatpush1.msra.mxu0 %v1310
      %1312 = vmatprep.subr.mxu0 0.0
      %v1313 = vand.u32 %v290, 4294901760
      %1314 = vmatpush1.msra.mxu0 %v1313
      %1315 = vmatprep.subr.mxu0 0.0
      %v1316 = vand.u32 %v291, 4294901760
      %1317 = vmatpush1.msra.mxu0 %v1316
      %1318 = vmatprep.subr.mxu0 0.0
      %v1319 = vand.u32 %v292, 4294901760
      %1320 = vmatpush1.msra.mxu0 %v1319
      %1321 = vmatprep.subr.mxu0 0.0
      %v1322 = vand.u32 %v293, 4294901760
      %1323 = vmatpush1.msra.mxu0 %v1322
      %v1324 = vand.u32 %v351, 4294901760
      %v1325 = vsub.f32 %v351, %v1324
      %v1326 = vand.u32 %v1325, 4294901760
      %v1327 = vsub.f32 %v1325, %v1326
      %v1328 = vand.u32 %v1327, 4294901760
      %1329 = vmatprep.mubr.f32.mxu0 %v1328
      %v1330 = vand.u32 %v349, 4294901760
      %v1331 = vsub.f32 %v349, %v1330
      %v1332 = vand.u32 %v1331, 4294901760
      %v1333 = vsub.f32 %v1331, %v1332
      %v1334 = vand.u32 %v1333, 4294901760
      %1335 = vmatmul.mubr.f32.gmra.mrb[0].mxu0 %v1334
      %v1336 = vpop.f32.mrb[0].mxu0
      %v1337 = vadd.f32 %v1225, %v1336
      %v1338 = vpop.f32.mrb[0].mxu0
      %1339 = vdwg.mxu0
      %1340 = vmatprep.subr.mxu0 0.0
      %v1341 = vand.u32 %v262, 4294901760
      %v1342 = vsub.f32 %v262, %v1341
      %v1343 = vand.u32 %v1342, 4294901760
      %v1344 = vsub.f32 %v1342, %v1343
      %v1345 = vand.u32 %v1344, 4294901760
      %1346 = vmatpush1.msra.mxu0 %v1345
      %1347 = vmatprep.subr.mxu0 0.0
      %v1348 = vand.u32 %v263, 4294901760
      %v1349 = vsub.f32 %v263, %v1348
      %v1350 = vand.u32 %v1349, 4294901760
      %v1351 = vsub.f32 %v1349, %v1350
      %v1352 = vand.u32 %v1351, 4294901760
      %1353 = vmatpush1.msra.mxu0 %v1352
      %1354 = vmatprep.subr.mxu0 0.0
      %v1355 = vand.u32 %v264, 4294901760
      %v1356 = vsub.f32 %v264, %v1355
      %v1357 = vand.u32 %v1356, 4294901760
      %v1358 = vsub.f32 %v1356, %v1357
      %v1359 = vand.u32 %v1358, 4294901760
      %1360 = vmatpush1.msra.mxu0 %v1359
      %1361 = vmatprep.subr.mxu0 0.0
      %v1362 = vand.u32 %v265, 4294901760
      %v1363 = vsub.f32 %v265, %v1362
      %v1364 = vand.u32 %v1363, 4294901760
      %v1365 = vsub.f32 %v1363, %v1364
      %v1366 = vand.u32 %v1365, 4294901760
      %1367 = vmatpush1.msra.mxu0 %v1366
      %1368 = vmatprep.subr.mxu0 0.0
      %v1369 = vand.u32 %v266, 4294901760
      %v1370 = vsub.f32 %v266, %v1369
      %v1371 = vand.u32 %v1370, 4294901760
      %v1372 = vsub.f32 %v1370, %v1371
      %v1373 = vand.u32 %v1372, 4294901760
      %1374 = vmatpush1.msra.mxu0 %v1373
      %1375 = vmatprep.subr.mxu0 0.0
      %v1376 = vand.u32 %v267, 4294901760
      %v1377 = vsub.f32 %v267, %v1376
      %v1378 = vand.u32 %v1377, 4294901760
      %v1379 = vsub.f32 %v1377, %v1378
      %v1380 = vand.u32 %v1379, 4294901760
      %1381 = vmatpush1.msra.mxu0 %v1380
      %1382 = vmatprep.subr.mxu0 0.0
      %v1383 = vand.u32 %v268, 4294901760
      %v1384 = vsub.f32 %v268, %v1383
      %v1385 = vand.u32 %v1384, 4294901760
      %v1386 = vsub.f32 %v1384, %v1385
      %v1387 = vand.u32 %v1386, 4294901760
      %1388 = vmatpush1.msra.mxu0 %v1387
      %1389 = vmatprep.subr.mxu0 0.0
      %v1390 = vand.u32 %v269, 4294901760
      %v1391 = vsub.f32 %v269, %v1390
      %v1392 = vand.u32 %v1391, 4294901760
      %v1393 = vsub.f32 %v1391, %v1392
      %v1394 = vand.u32 %v1393, 4294901760
      %1395 = vmatpush1.msra.mxu0 %v1394
      %1396 = vmatprep.subr.mxu0 0.0
      %v1397 = vand.u32 %v270, 4294901760
      %v1398 = vsub.f32 %v270, %v1397
      %v1399 = vand.u32 %v1398, 4294901760
      %v1400 = vsub.f32 %v1398, %v1399
      %v1401 = vand.u32 %v1400, 4294901760
      %1402 = vmatpush1.msra.mxu0 %v1401
      %1403 = vmatprep.subr.mxu0 0.0
      %v1404 = vand.u32 %v271, 4294901760
      %v1405 = vsub.f32 %v271, %v1404
      %v1406 = vand.u32 %v1405, 4294901760
      %v1407 = vsub.f32 %v1405, %v1406
      %v1408 = vand.u32 %v1407, 4294901760
      %1409 = vmatpush1.msra.mxu0 %v1408
      %1410 = vmatprep.subr.mxu0 0.0
      %v1411 = vand.u32 %v272, 4294901760
      %v1412 = vsub.f32 %v272, %v1411
      %v1413 = vand.u32 %v1412, 4294901760
      %v1414 = vsub.f32 %v1412, %v1413
      %v1415 = vand.u32 %v1414, 4294901760
      %1416 = vmatpush1.msra.mxu0 %v1415
      %1417 = vmatprep.subr.mxu0 0.0
      %v1418 = vand.u32 %v273, 4294901760
      %v1419 = vsub.f32 %v273, %v1418
      %v1420 = vand.u32 %v1419, 4294901760
      %v1421 = vsub.f32 %v1419, %v1420
      %v1422 = vand.u32 %v1421, 4294901760
      %1423 = vmatpush1.msra.mxu0 %v1422
      %1424 = vmatprep.subr.mxu0 0.0
      %v1425 = vand.u32 %v274, 4294901760
      %v1426 = vsub.f32 %v274, %v1425
      %v1427 = vand.u32 %v1426, 4294901760
      %v1428 = vsub.f32 %v1426, %v1427
      %v1429 = vand.u32 %v1428, 4294901760
      %1430 = vmatpush1.msra.mxu0 %v1429
      %1431 = vmatprep.subr.mxu0 0.0
      %v1432 = vand.u32 %v275, 4294901760
      %v1433 = vsub.f32 %v275, %v1432
      %v1434 = vand.u32 %v1433, 4294901760
      %v1435 = vsub.f32 %v1433, %v1434
      %v1436 = vand.u32 %v1435, 4294901760
      %1437 = vmatpush1.msra.mxu0 %v1436
      %1438 = vmatprep.subr.mxu0 0.0
      %v1439 = vand.u32 %v276, 4294901760
      %v1440 = vsub.f32 %v276, %v1439
      %v1441 = vand.u32 %v1440, 4294901760
      %v1442 = vsub.f32 %v1440, %v1441
      %v1443 = vand.u32 %v1442, 4294901760
      %1444 = vmatpush1.msra.mxu0 %v1443
      %1445 = vmatprep.subr.mxu0 0.0
      %v1446 = vand.u32 %v277, 4294901760
      %v1447 = vsub.f32 %v277, %v1446
      %v1448 = vand.u32 %v1447, 4294901760
      %v1449 = vsub.f32 %v1447, %v1448
      %v1450 = vand.u32 %v1449, 4294901760
      %1451 = vmatpush1.msra.mxu0 %v1450
      %1452 = vmatprep.subr.mxu0 0.0
      %v1453 = vand.u32 %v278, 4294901760
      %v1454 = vsub.f32 %v278, %v1453
      %v1455 = vand.u32 %v1454, 4294901760
      %v1456 = vsub.f32 %v1454, %v1455
      %v1457 = vand.u32 %v1456, 4294901760
      %1458 = vmatpush1.msra.mxu0 %v1457
      %1459 = vmatprep.subr.mxu0 0.0
      %v1460 = vand.u32 %v279, 4294901760
      %v1461 = vsub.f32 %v279, %v1460
      %v1462 = vand.u32 %v1461, 4294901760
      %v1463 = vsub.f32 %v1461, %v1462
      %v1464 = vand.u32 %v1463, 4294901760
      %1465 = vmatpush1.msra.mxu0 %v1464
      %1466 = vmatprep.subr.mxu0 0.0
      %v1467 = vand.u32 %v280, 4294901760
      %v1468 = vsub.f32 %v280, %v1467
      %v1469 = vand.u32 %v1468, 4294901760
      %v1470 = vsub.f32 %v1468, %v1469
      %v1471 = vand.u32 %v1470, 4294901760
      %1472 = vmatpush1.msra.mxu0 %v1471
      %1473 = vmatprep.subr.mxu0 0.0
      %v1474 = vand.u32 %v281, 4294901760
      %v1475 = vsub.f32 %v281, %v1474
      %v1476 = vand.u32 %v1475, 4294901760
      %v1477 = vsub.f32 %v1475, %v1476
      %v1478 = vand.u32 %v1477, 4294901760
      %1479 = vmatpush1.msra.mxu0 %v1478
      %1480 = vmatprep.subr.mxu0 0.0
      %v1481 = vand.u32 %v282, 4294901760
      %v1482 = vsub.f32 %v282, %v1481
      %v1483 = vand.u32 %v1482, 4294901760
      %v1484 = vsub.f32 %v1482, %v1483
      %v1485 = vand.u32 %v1484, 4294901760
      %1486 = vmatpush1.msra.mxu0 %v1485
      %1487 = vmatprep.subr.mxu0 0.0
      %v1488 = vand.u32 %v283, 4294901760
      %v1489 = vsub.f32 %v283, %v1488
      %v1490 = vand.u32 %v1489, 4294901760
      %v1491 = vsub.f32 %v1489, %v1490
      %v1492 = vand.u32 %v1491, 4294901760
      %1493 = vmatpush1.msra.mxu0 %v1492
      %1494 = vmatprep.subr.mxu0 0.0
      %v1495 = vand.u32 %v284, 4294901760
      %v1496 = vsub.f32 %v284, %v1495
      %v1497 = vand.u32 %v1496, 4294901760
      %v1498 = vsub.f32 %v1496, %v1497
      %v1499 = vand.u32 %v1498, 4294901760
      %1500 = vmatpush1.msra.mxu0 %v1499
      %1501 = vmatprep.subr.mxu0 0.0
      %v1502 = vand.u32 %v285, 4294901760
      %v1503 = vsub.f32 %v285, %v1502
      %v1504 = vand.u32 %v1503, 4294901760
      %v1505 = vsub.f32 %v1503, %v1504
      %v1506 = vand.u32 %v1505, 4294901760
      %1507 = vmatpush1.msra.mxu0 %v1506
      %1508 = vmatprep.subr.mxu0 0.0
      %v1509 = vand.u32 %v286, 4294901760
      %v1510 = vsub.f32 %v286, %v1509
      %v1511 = vand.u32 %v1510, 4294901760
      %v1512 = vsub.f32 %v1510, %v1511
      %v1513 = vand.u32 %v1512, 4294901760
      %1514 = vmatpush1.msra.mxu0 %v1513
      %1515 = vmatprep.subr.mxu0 0.0
      %v1516 = vand.u32 %v287, 4294901760
      %v1517 = vsub.f32 %v287, %v1516
      %v1518 = vand.u32 %v1517, 4294901760
      %v1519 = vsub.f32 %v1517, %v1518
      %v1520 = vand.u32 %v1519, 4294901760
      %1521 = vmatpush1.msra.mxu0 %v1520
      %1522 = vmatprep.subr.mxu0 0.0
      %v1523 = vand.u32 %v288, 4294901760
      %v1524 = vsub.f32 %v288, %v1523
      %v1525 = vand.u32 %v1524, 4294901760
      %v1526 = vsub.f32 %v1524, %v1525
      %v1527 = vand.u32 %v1526, 4294901760
      %1528 = vmatpush1.msra.mxu0 %v1527
      %1529 = vmatprep.subr.mxu0 0.0
      %v1530 = vand.u32 %v289, 4294901760
      %v1531 = vsub.f32 %v289, %v1530
      %v1532 = vand.u32 %v1531, 4294901760
      %v1533 = vsub.f32 %v1531, %v1532
      %v1534 = vand.u32 %v1533, 4294901760
      %1535 = vmatpush1.msra.mxu0 %v1534
      %1536 = vmatprep.subr.mxu0 0.0
      %v1537 = vand.u32 %v290, 4294901760
      %v1538 = vsub.f32 %v290, %v1537
      %v1539 = vand.u32 %v1538, 4294901760
      %v1540 = vsub.f32 %v1538, %v1539
      %v1541 = vand.u32 %v1540, 4294901760
      %1542 = vmatpush1.msra.mxu0 %v1541
      %1543 = vmatprep.subr.mxu0 0.0
      %v1544 = vand.u32 %v291, 4294901760
      %v1545 = vsub.f32 %v291, %v1544
      %v1546 = vand.u32 %v1545, 4294901760
      %v1547 = vsub.f32 %v1545, %v1546
      %v1548 = vand.u32 %v1547, 4294901760
      %1549 = vmatpush1.msra.mxu0 %v1548
      %1550 = vmatprep.subr.mxu0 0.0
      %v1551 = vand.u32 %v292, 4294901760
      %v1552 = vsub.f32 %v292, %v1551
      %v1553 = vand.u32 %v1552, 4294901760
      %v1554 = vsub.f32 %v1552, %v1553
      %v1555 = vand.u32 %v1554, 4294901760
      %1556 = vmatpush1.msra.mxu0 %v1555
      %1557 = vmatprep.subr.mxu0 0.0
      %v1558 = vand.u32 %v293, 4294901760
      %v1559 = vsub.f32 %v293, %v1558
      %v1560 = vand.u32 %v1559, 4294901760
      %v1561 = vsub.f32 %v1559, %v1560
      %v1562 = vand.u32 %v1561, 4294901760
      %1563 = vmatpush1.msra.mxu0 %v1562
      %v1564 = vand.u32 %v351, 4294901760
      %1565 = vmatprep.mubr.f32.mxu0 %v1564
      %v1566 = vand.u32 %v349, 4294901760
      %1567 = vmatmul.mubr.f32.gmra.mrb[0].mxu0 %v1566
      %v1568 = vpop.f32.mrb[0].mxu0
      %v1569 = vadd.f32 %v1337, %v1568
      %v1570 = vpop.f32.mrb[0].mxu0
      %1571 = vdwg.mxu0
      %1572 = vmatprep.subr.mxu0 0.0
      %v1573 = vand.u32 %v262, 4294901760
      %v1574 = vsub.f32 %v262, %v1573
      %1575 = vmatpush1.msra.mxu0 %v1574
      %1576 = vmatprep.subr.mxu0 0.0
      %v1577 = vand.u32 %v263, 4294901760
      %v1578 = vsub.f32 %v263, %v1577
      %1579 = vmatpush1.msra.mxu0 %v1578
      %1580 = vmatprep.subr.mxu0 0.0
      %v1581 = vand.u32 %v264, 4294901760
      %v1582 = vsub.f32 %v264, %v1581
      %1583 = vmatpush1.msra.mxu0 %v1582
      %1584 = vmatprep.subr.mxu0 0.0
      %v1585 = vand.u32 %v265, 4294901760
      %v1586 = vsub.f32 %v265, %v1585
      %1587 = vmatpush1.msra.mxu0 %v1586
      %1588 = vmatprep.subr.mxu0 0.0
      %v1589 = vand.u32 %v266, 4294901760
      %v1590 = vsub.f32 %v266, %v1589
      %1591 = vmatpush1.msra.mxu0 %v1590
      %1592 = vmatprep.subr.mxu0 0.0
      %v1593 = vand.u32 %v267, 4294901760
      %v1594 = vsub.f32 %v267, %v1593
      %1595 = vmatpush1.msra.mxu0 %v1594
      %1596 = vmatprep.subr.mxu0 0.0
      %v1597 = vand.u32 %v268, 4294901760
      %v1598 = vsub.f32 %v268, %v1597
      %1599 = vmatpush1.msra.mxu0 %v1598
      %1600 = vmatprep.subr.mxu0 0.0
      %v1601 = vand.u32 %v269, 4294901760
      %v1602 = vsub.f32 %v269, %v1601
      %1603 = vmatpush1.msra.mxu0 %v1602
      %1604 = vmatprep.subr.mxu0 0.0
      %v1605 = vand.u32 %v270, 4294901760
      %v1606 = vsub.f32 %v270, %v1605
      %1607 = vmatpush1.msra.mxu0 %v1606
      %1608 = vmatprep.subr.mxu0 0.0
      %v1609 = vand.u32 %v271, 4294901760
      %v1610 = vsub.f32 %v271, %v1609
      %1611 = vmatpush1.msra.mxu0 %v1610
      %1612 = vmatprep.subr.mxu0 0.0
      %v1613 = vand.u32 %v272, 4294901760
      %v1614 = vsub.f32 %v272, %v1613
      %1615 = vmatpush1.msra.mxu0 %v1614
      %1616 = vmatprep.subr.mxu0 0.0
      %v1617 = vand.u32 %v273, 4294901760
      %v1618 = vsub.f32 %v273, %v1617
      %1619 = vmatpush1.msra.mxu0 %v1618
      %1620 = vmatprep.subr.mxu0 0.0
      %v1621 = vand.u32 %v274, 4294901760
      %v1622 = vsub.f32 %v274, %v1621
      %1623 = vmatpush1.msra.mxu0 %v1622
      %1624 = vmatprep.subr.mxu0 0.0
      %v1625 = vand.u32 %v275, 4294901760
      %v1626 = vsub.f32 %v275, %v1625
      %1627 = vmatpush1.msra.mxu0 %v1626
      %1628 = vmatprep.subr.mxu0 0.0
      %v1629 = vand.u32 %v276, 4294901760
      %v1630 = vsub.f32 %v276, %v1629
      %1631 = vmatpush1.msra.mxu0 %v1630
      %1632 = vmatprep.subr.mxu0 0.0
      %v1633 = vand.u32 %v277, 4294901760
      %v1634 = vsub.f32 %v277, %v1633
      %1635 = vmatpush1.msra.mxu0 %v1634
      %1636 = vmatprep.subr.mxu0 0.0
      %v1637 = vand.u32 %v278, 4294901760
      %v1638 = vsub.f32 %v278, %v1637
      %1639 = vmatpush1.msra.mxu0 %v1638
      %1640 = vmatprep.subr.mxu0 0.0
      %v1641 = vand.u32 %v279, 4294901760
      %v1642 = vsub.f32 %v279, %v1641
      %1643 = vmatpush1.msra.mxu0 %v1642
      %1644 = vmatprep.subr.mxu0 0.0
      %v1645 = vand.u32 %v280, 4294901760
      %v1646 = vsub.f32 %v280, %v1645
      %1647 = vmatpush1.msra.mxu0 %v1646
      %1648 = vmatprep.subr.mxu0 0.0
      %v1649 = vand.u32 %v281, 4294901760
      %v1650 = vsub.f32 %v281, %v1649
      %1651 = vmatpush1.msra.mxu0 %v1650
      %1652 = vmatprep.subr.mxu0 0.0
      %v1653 = vand.u32 %v282, 4294901760
      %v1654 = vsub.f32 %v282, %v1653
      %1655 = vmatpush1.msra.mxu0 %v1654
      %1656 = vmatprep.subr.mxu0 0.0
      %v1657 = vand.u32 %v283, 4294901760
      %v1658 = vsub.f32 %v283, %v1657
      %1659 = vmatpush1.msra.mxu0 %v1658
      %1660 = vmatprep.subr.mxu0 0.0
      %v1661 = vand.u32 %v284, 4294901760
      %v1662 = vsub.f32 %v284, %v1661
      %1663 = vmatpush1.msra.mxu0 %v1662
      %1664 = vmatprep.subr.mxu0 0.0
      %v1665 = vand.u32 %v285, 4294901760
      %v1666 = vsub.f32 %v285, %v1665
      %1667 = vmatpush1.msra.mxu0 %v1666
      %1668 = vmatprep.subr.mxu0 0.0
      %v1669 = vand.u32 %v286, 4294901760
      %v1670 = vsub.f32 %v286, %v1669
      %1671 = vmatpush1.msra.mxu0 %v1670
      %1672 = vmatprep.subr.mxu0 0.0
      %v1673 = vand.u32 %v287, 4294901760
      %v1674 = vsub.f32 %v287, %v1673
      %1675 = vmatpush1.msra.mxu0 %v1674
      %1676 = vmatprep.subr.mxu0 0.0
      %v1677 = vand.u32 %v288, 4294901760
      %v1678 = vsub.f32 %v288, %v1677
      %1679 = vmatpush1.msra.mxu0 %v1678
      %1680 = vmatprep.subr.mxu0 0.0
      %v1681 = vand.u32 %v289, 4294901760
      %v1682 = vsub.f32 %v289, %v1681
      %1683 = vmatpush1.msra.mxu0 %v1682
      %1684 = vmatprep.subr.mxu0 0.0
      %v1685 = vand.u32 %v290, 4294901760
      %v1686 = vsub.f32 %v290, %v1685
      %1687 = vmatpush1.msra.mxu0 %v1686
      %1688 = vmatprep.subr.mxu0 0.0
      %v1689 = vand.u32 %v291, 4294901760
      %v1690 = vsub.f32 %v291, %v1689
      %1691 = vmatpush1.msra.mxu0 %v1690
      %1692 = vmatprep.subr.mxu0 0.0
      %v1693 = vand.u32 %v292, 4294901760
      %v1694 = vsub.f32 %v292, %v1693
      %1695 = vmatpush1.msra.mxu0 %v1694
      %1696 = vmatprep.subr.mxu0 0.0
      %v1697 = vand.u32 %v293, 4294901760
      %v1698 = vsub.f32 %v293, %v1697
      %1699 = vmatpush1.msra.mxu0 %v1698
      %v1700 = vand.u32 %v351, 4294901760
      %v1701 = vsub.f32 %v351, %v1700
      %1702 = vmatprep.mubr.f32.mxu0 %v1701
      %v1703 = vand.u32 %v349, 4294901760
      %v1704 = vsub.f32 %v349, %v1703
      %1705 = vmatmul.mubr.f32.gmra.mrb[0].mxu0 %v1704
      %v1706 = vpop.f32.mrb[0].mxu0
      %v1707 = vadd.f32 %v1569, %v1706
      %v1708 = vpop.f32.mrb[0].mxu0
      %1709 = vdwg.mxu0
      %1710 = vmatprep.subr.mxu0 0.0
      %v1711 = vand.u32 %v262, 4294901760
      %1712 = vmatpush1.msra.mxu0 %v1711
      %1713 = vmatprep.subr.mxu0 0.0
      %v1714 = vand.u32 %v263, 4294901760
      %1715 = vmatpush1.msra.mxu0 %v1714
      %1716 = vmatprep.subr.mxu0 0.0
      %v1717 = vand.u32 %v264, 4294901760
      %1718 = vmatpush1.msra.mxu0 %v1717
      %1719 = vmatprep.subr.mxu0 0.0
      %v1720 = vand.u32 %v265, 4294901760
      %1721 = vmatpush1.msra.mxu0 %v1720
      %1722 = vmatprep.subr.mxu0 0.0
      %v1723 = vand.u32 %v266, 4294901760
      %1724 = vmatpush1.msra.mxu0 %v1723
      %1725 = vmatprep.subr.mxu0 0.0
      %v1726 = vand.u32 %v267, 4294901760
      %1727 = vmatpush1.msra.mxu0 %v1726
      %1728 = vmatprep.subr.mxu0 0.0
      %v1729 = vand.u32 %v268, 4294901760
      %1730 = vmatpush1.msra.mxu0 %v1729
      %1731 = vmatprep.subr.mxu0 0.0
      %v1732 = vand.u32 %v269, 4294901760
      %1733 = vmatpush1.msra.mxu0 %v1732
      %1734 = vmatprep.subr.mxu0 0.0
      %v1735 = vand.u32 %v270, 4294901760
      %1736 = vmatpush1.msra.mxu0 %v1735
      %1737 = vmatprep.subr.mxu0 0.0
      %v1738 = vand.u32 %v271, 4294901760
      %1739 = vmatpush1.msra.mxu0 %v1738
      %1740 = vmatprep.subr.mxu0 0.0
      %v1741 = vand.u32 %v272, 4294901760
      %1742 = vmatpush1.msra.mxu0 %v1741
      %1743 = vmatprep.subr.mxu0 0.0
      %v1744 = vand.u32 %v273, 4294901760
      %1745 = vmatpush1.msra.mxu0 %v1744
      %1746 = vmatprep.subr.mxu0 0.0
      %v1747 = vand.u32 %v274, 4294901760
      %1748 = vmatpush1.msra.mxu0 %v1747
      %1749 = vmatprep.subr.mxu0 0.0
      %v1750 = vand.u32 %v275, 4294901760
      %1751 = vmatpush1.msra.mxu0 %v1750
      %1752 = vmatprep.subr.mxu0 0.0
      %v1753 = vand.u32 %v276, 4294901760
      %1754 = vmatpush1.msra.mxu0 %v1753
      %1755 = vmatprep.subr.mxu0 0.0
      %v1756 = vand.u32 %v277, 4294901760
      %1757 = vmatpush1.msra.mxu0 %v1756
      %1758 = vmatprep.subr.mxu0 0.0
      %v1759 = vand.u32 %v278, 4294901760
      %1760 = vmatpush1.msra.mxu0 %v1759
      %1761 = vmatprep.subr.mxu0 0.0
      %v1762 = vand.u32 %v279, 4294901760
      %1763 = vmatpush1.msra.mxu0 %v1762
      %1764 = vmatprep.subr.mxu0 0.0
      %v1765 = vand.u32 %v280, 4294901760
      %1766 = vmatpush1.msra.mxu0 %v1765
      %1767 = vmatprep.subr.mxu0 0.0
      %v1768 = vand.u32 %v281, 4294901760
      %1769 = vmatpush1.msra.mxu0 %v1768
      %1770 = vmatprep.subr.mxu0 0.0
      %v1771 = vand.u32 %v282, 4294901760
      %1772 = vmatpush1.msra.mxu0 %v1771
      %1773 = vmatprep.subr.mxu0 0.0
      %v1774 = vand.u32 %v283, 4294901760
      %1775 = vmatpush1.msra.mxu0 %v1774
      %1776 = vmatprep.subr.mxu0 0.0
      %v1777 = vand.u32 %v284, 4294901760
      %1778 = vmatpush1.msra.mxu0 %v1777
      %1779 = vmatprep.subr.mxu0 0.0
      %v1780 = vand.u32 %v285, 4294901760
      %1781 = vmatpush1.msra.mxu0 %v1780
      %1782 = vmatprep.subr.mxu0 0.0
      %v1783 = vand.u32 %v286, 4294901760
      %1784 = vmatpush1.msra.mxu0 %v1783
      %1785 = vmatprep.subr.mxu0 0.0
      %v1786 = vand.u32 %v287, 4294901760
      %1787 = vmatpush1.msra.mxu0 %v1786
      %1788 = vmatprep.subr.mxu0 0.0
      %v1789 = vand.u32 %v288, 4294901760
      %1790 = vmatpush1.msra.mxu0 %v1789
      %1791 = vmatprep.subr.mxu0 0.0
      %v1792 = vand.u32 %v289, 4294901760
      %1793 = vmatpush1.msra.mxu0 %v1792
      %1794 = vmatprep.subr.mxu0 0.0
      %v1795 = vand.u32 %v290, 4294901760
      %1796 = vmatpush1.msra.mxu0 %v1795
      %1797 = vmatprep.subr.mxu0 0.0
      %v1798 = vand.u32 %v291, 4294901760
      %1799 = vmatpush1.msra.mxu0 %v1798
      %1800 = vmatprep.subr.mxu0 0.0
      %v1801 = vand.u32 %v292, 4294901760
      %1802 = vmatpush1.msra.mxu0 %v1801
      %1803 = vmatprep.subr.mxu0 0.0
      %v1804 = vand.u32 %v293, 4294901760
      %1805 = vmatpush1.msra.mxu0 %v1804
      %v1806 = vand.u32 %v351, 4294901760
      %v1807 = vsub.f32 %v351, %v1806
      %v1808 = vand.u32 %v1807, 4294901760
      %1809 = vmatprep.mubr.f32.mxu0 %v1808
      %v1810 = vand.u32 %v349, 4294901760
      %v1811 = vsub.f32 %v349, %v1810
      %v1812 = vand.u32 %v1811, 4294901760
      %1813 = vmatmul.mubr.f32.gmra.mrb[0].mxu0 %v1812
      %v1814 = vpop.f32.mrb[0].mxu0
      %v1815 = vadd.f32 %v1707, %v1814
      %v1816 = vpop.f32.mrb[0].mxu0
      %1817 = vdwg.mxu0
      %1818 = vmatprep.subr.mxu0 0.0
      %v1819 = vand.u32 %v262, 4294901760
      %v1820 = vsub.f32 %v262, %v1819
      %v1821 = vand.u32 %v1820, 4294901760
      %1822 = vmatpush1.msra.mxu0 %v1821
      %1823 = vmatprep.subr.mxu0 0.0
      %v1824 = vand.u32 %v263, 4294901760
      %v1825 = vsub.f32 %v263, %v1824
      %v1826 = vand.u32 %v1825, 4294901760
      %1827 = vmatpush1.msra.mxu0 %v1826
      %1828 = vmatprep.subr.mxu0 0.0
      %v1829 = vand.u32 %v264, 4294901760
      %v1830 = vsub.f32 %v264, %v1829
      %v1831 = vand.u32 %v1830, 4294901760
      %1832 = vmatpush1.msra.mxu0 %v1831
      %1833 = vmatprep.subr.mxu0 0.0
      %v1834 = vand.u32 %v265, 4294901760
      %v1835 = vsub.f32 %v265, %v1834
      %v1836 = vand.u32 %v1835, 4294901760
      %1837 = vmatpush1.msra.mxu0 %v1836
      %1838 = vmatprep.subr.mxu0 0.0
      %v1839 = vand.u32 %v266, 4294901760
      %v1840 = vsub.f32 %v266, %v1839
      %v1841 = vand.u32 %v1840, 4294901760
      %1842 = vmatpush1.msra.mxu0 %v1841
      %1843 = vmatprep.subr.mxu0 0.0
      %v1844 = vand.u32 %v267, 4294901760
      %v1845 = vsub.f32 %v267, %v1844
      %v1846 = vand.u32 %v1845, 4294901760
      %1847 = vmatpush1.msra.mxu0 %v1846
      %1848 = vmatprep.subr.mxu0 0.0
      %v1849 = vand.u32 %v268, 4294901760
      %v1850 = vsub.f32 %v268, %v1849
      %v1851 = vand.u32 %v1850, 4294901760
      %1852 = vmatpush1.msra.mxu0 %v1851
      %1853 = vmatprep.subr.mxu0 0.0
      %v1854 = vand.u32 %v269, 4294901760
      %v1855 = vsub.f32 %v269, %v1854
      %v1856 = vand.u32 %v1855, 4294901760
      %1857 = vmatpush1.msra.mxu0 %v1856
      %1858 = vmatprep.subr.mxu0 0.0
      %v1859 = vand.u32 %v270, 4294901760
      %v1860 = vsub.f32 %v270, %v1859
      %v1861 = vand.u32 %v1860, 4294901760
      %1862 = vmatpush1.msra.mxu0 %v1861
      %1863 = vmatprep.subr.mxu0 0.0
      %v1864 = vand.u32 %v271, 4294901760
      %v1865 = vsub.f32 %v271, %v1864
      %v1866 = vand.u32 %v1865, 4294901760
      %1867 = vmatpush1.msra.mxu0 %v1866
      %1868 = vmatprep.subr.mxu0 0.0
      %v1869 = vand.u32 %v272, 4294901760
      %v1870 = vsub.f32 %v272, %v1869
      %v1871 = vand.u32 %v1870, 4294901760
      %1872 = vmatpush1.msra.mxu0 %v1871
      %1873 = vmatprep.subr.mxu0 0.0
      %v1874 = vand.u32 %v273, 4294901760
      %v1875 = vsub.f32 %v273, %v1874
      %v1876 = vand.u32 %v1875, 4294901760
      %1877 = vmatpush1.msra.mxu0 %v1876
      %1878 = vmatprep.subr.mxu0 0.0
      %v1879 = vand.u32 %v274, 4294901760
      %v1880 = vsub.f32 %v274, %v1879
      %v1881 = vand.u32 %v1880, 4294901760
      %1882 = vmatpush1.msra.mxu0 %v1881
      %1883 = vmatprep.subr.mxu0 0.0
      %v1884 = vand.u32 %v275, 4294901760
      %v1885 = vsub.f32 %v275, %v1884
      %v1886 = vand.u32 %v1885, 4294901760
      %1887 = vmatpush1.msra.mxu0 %v1886
      %1888 = vmatprep.subr.mxu0 0.0
      %v1889 = vand.u32 %v276, 4294901760
      %v1890 = vsub.f32 %v276, %v1889
      %v1891 = vand.u32 %v1890, 4294901760
      %1892 = vmatpush1.msra.mxu0 %v1891
      %1893 = vmatprep.subr.mxu0 0.0
      %v1894 = vand.u32 %v277, 4294901760
      %v1895 = vsub.f32 %v277, %v1894
      %v1896 = vand.u32 %v1895, 4294901760
      %1897 = vmatpush1.msra.mxu0 %v1896
      %1898 = vmatprep.subr.mxu0 0.0
      %v1899 = vand.u32 %v278, 4294901760
      %v1900 = vsub.f32 %v278, %v1899
      %v1901 = vand.u32 %v1900, 4294901760
      %1902 = vmatpush1.msra.mxu0 %v1901
      %1903 = vmatprep.subr.mxu0 0.0
      %v1904 = vand.u32 %v279, 4294901760
      %v1905 = vsub.f32 %v279, %v1904
      %v1906 = vand.u32 %v1905, 4294901760
      %1907 = vmatpush1.msra.mxu0 %v1906
      %1908 = vmatprep.subr.mxu0 0.0
      %v1909 = vand.u32 %v280, 4294901760
      %v1910 = vsub.f32 %v280, %v1909
      %v1911 = vand.u32 %v1910, 4294901760
      %1912 = vmatpush1.msra.mxu0 %v1911
      %1913 = vmatprep.subr.mxu0 0.0
      %v1914 = vand.u32 %v281, 4294901760
      %v1915 = vsub.f32 %v281, %v1914
      %v1916 = vand.u32 %v1915, 4294901760
      %1917 = vmatpush1.msra.mxu0 %v1916
      %1918 = vmatprep.subr.mxu0 0.0
      %v1919 = vand.u32 %v282, 4294901760
      %v1920 = vsub.f32 %v282, %v1919
      %v1921 = vand.u32 %v1920, 4294901760
      %1922 = vmatpush1.msra.mxu0 %v1921
      %1923 = vmatprep.subr.mxu0 0.0
      %v1924 = vand.u32 %v283, 4294901760
      %v1925 = vsub.f32 %v283, %v1924
      %v1926 = vand.u32 %v1925, 4294901760
      %1927 = vmatpush1.msra.mxu0 %v1926
      %1928 = vmatprep.subr.mxu0 0.0
      %v1929 = vand.u32 %v284, 4294901760
      %v1930 = vsub.f32 %v284, %v1929
      %v1931 = vand.u32 %v1930, 4294901760
      %1932 = vmatpush1.msra.mxu0 %v1931
      %1933 = vmatprep.subr.mxu0 0.0
      %v1934 = vand.u32 %v285, 4294901760
      %v1935 = vsub.f32 %v285, %v1934
      %v1936 = vand.u32 %v1935, 4294901760
      %1937 = vmatpush1.msra.mxu0 %v1936
      %1938 = vmatprep.subr.mxu0 0.0
      %v1939 = vand.u32 %v286, 4294901760
      %v1940 = vsub.f32 %v286, %v1939
      %v1941 = vand.u32 %v1940, 4294901760
      %1942 = vmatpush1.msra.mxu0 %v1941
      %1943 = vmatprep.subr.mxu0 0.0
      %v1944 = vand.u32 %v287, 4294901760
      %v1945 = vsub.f32 %v287, %v1944
      %v1946 = vand.u32 %v1945, 4294901760
      %1947 = vmatpush1.msra.mxu0 %v1946
      %1948 = vmatprep.subr.mxu0 0.0
      %v1949 = vand.u32 %v288, 4294901760
      %v1950 = vsub.f32 %v288, %v1949
      %v1951 = vand.u32 %v1950, 4294901760
      %1952 = vmatpush1.msra.mxu0 %v1951
      %1953 = vmatprep.subr.mxu0 0.0
      %v1954 = vand.u32 %v289, 4294901760
      %v1955 = vsub.f32 %v289, %v1954
      %v1956 = vand.u32 %v1955, 4294901760
      %1957 = vmatpush1.msra.mxu0 %v1956
      %1958 = vmatprep.subr.mxu0 0.0
      %v1959 = vand.u32 %v290, 4294901760
      %v1960 = vsub.f32 %v290, %v1959
      %v1961 = vand.u32 %v1960, 4294901760
      %1962 = vmatpush1.msra.mxu0 %v1961
      %1963 = vmatprep.subr.mxu0 0.0
      %v1964 = vand.u32 %v291, 4294901760
      %v1965 = vsub.f32 %v291, %v1964
      %v1966 = vand.u32 %v1965, 4294901760
      %1967 = vmatpush1.msra.mxu0 %v1966
      %1968 = vmatprep.subr.mxu0 0.0
      %v1969 = vand.u32 %v292, 4294901760
      %v1970 = vsub.f32 %v292, %v1969
      %v1971 = vand.u32 %v1970, 4294901760
      %1972 = vmatpush1.msra.mxu0 %v1971
      %1973 = vmatprep.subr.mxu0 0.0
      %v1974 = vand.u32 %v293, 4294901760
      %v1975 = vsub.f32 %v293, %v1974
      %v1976 = vand.u32 %v1975, 4294901760
      %1977 = vmatpush1.msra.mxu0 %v1976
      %v1978 = vand.u32 %v351, 4294901760
      %1979 = vmatprep.mubr.f32.mxu0 %v1978
      %v1980 = vand.u32 %v349, 4294901760
      %1981 = vmatmul.mubr.f32.gmra.mrb[0].mxu0 %v1980
      %v1982 = vpop.f32.mrb[0].mxu0
      %v1983 = vadd.f32 %v1815, %v1982
      %v1984 = vpop.f32.mrb[0].mxu0
      %1985 = vdwg.mxu0
      %1986 = vmatprep.subr.mxu0 0.0
      %v1987 = vand.u32 %v262, 4294901760
      %1988 = vmatpush1.msra.mxu0 %v1987
      %1989 = vmatprep.subr.mxu0 0.0
      %v1990 = vand.u32 %v263, 4294901760
      %1991 = vmatpush1.msra.mxu0 %v1990
      %1992 = vmatprep.subr.mxu0 0.0
      %v1993 = vand.u32 %v264, 4294901760
      %1994 = vmatpush1.msra.mxu0 %v1993
      %1995 = vmatprep.subr.mxu0 0.0
      %v1996 = vand.u32 %v265, 4294901760
      %1997 = vmatpush1.msra.mxu0 %v1996
      %1998 = vmatprep.subr.mxu0 0.0
      %v1999 = vand.u32 %v266, 4294901760
      %2000 = vmatpush1.msra.mxu0 %v1999
      %2001 = vmatprep.subr.mxu0 0.0
      %v2002 = vand.u32 %v267, 4294901760
      %2003 = vmatpush1.msra.mxu0 %v2002
      %2004 = vmatprep.subr.mxu0 0.0
      %v2005 = vand.u32 %v268, 4294901760
      %2006 = vmatpush1.msra.mxu0 %v2005
      %2007 = vmatprep.subr.mxu0 0.0
      %v2008 = vand.u32 %v269, 4294901760
      %2009 = vmatpush1.msra.mxu0 %v2008
      %2010 = vmatprep.subr.mxu0 0.0
      %v2011 = vand.u32 %v270, 4294901760
      %2012 = vmatpush1.msra.mxu0 %v2011
      %2013 = vmatprep.subr.mxu0 0.0
      %v2014 = vand.u32 %v271, 4294901760
      %2015 = vmatpush1.msra.mxu0 %v2014
      %2016 = vmatprep.subr.mxu0 0.0
      %v2017 = vand.u32 %v272, 4294901760
      %2018 = vmatpush1.msra.mxu0 %v2017
      %2019 = vmatprep.subr.mxu0 0.0
      %v2020 = vand.u32 %v273, 4294901760
      %2021 = vmatpush1.msra.mxu0 %v2020
      %2022 = vmatprep.subr.mxu0 0.0
      %v2023 = vand.u32 %v274, 4294901760
      %2024 = vmatpush1.msra.mxu0 %v2023
      %2025 = vmatprep.subr.mxu0 0.0
      %v2026 = vand.u32 %v275, 4294901760
      %2027 = vmatpush1.msra.mxu0 %v2026
      %2028 = vmatprep.subr.mxu0 0.0
      %v2029 = vand.u32 %v276, 4294901760
      %2030 = vmatpush1.msra.mxu0 %v2029
      %2031 = vmatprep.subr.mxu0 0.0
      %v2032 = vand.u32 %v277, 4294901760
      %2033 = vmatpush1.msra.mxu0 %v2032
      %2034 = vmatprep.subr.mxu0 0.0
      %v2035 = vand.u32 %v278, 4294901760
      %2036 = vmatpush1.msra.mxu0 %v2035
      %2037 = vmatprep.subr.mxu0 0.0
      %v2038 = vand.u32 %v279, 4294901760
      %2039 = vmatpush1.msra.mxu0 %v2038
      %2040 = vmatprep.subr.mxu0 0.0
      %v2041 = vand.u32 %v280, 4294901760
      %2042 = vmatpush1.msra.mxu0 %v2041
      %2043 = vmatprep.subr.mxu0 0.0
      %v2044 = vand.u32 %v281, 4294901760
      %2045 = vmatpush1.msra.mxu0 %v2044
      %2046 = vmatprep.subr.mxu0 0.0
      %v2047 = vand.u32 %v282, 4294901760
      %2048 = vmatpush1.msra.mxu0 %v2047
      %2049 = vmatprep.subr.mxu0 0.0
      %v2050 = vand.u32 %v283, 4294901760
      %2051 = vmatpush1.msra.mxu0 %v2050
      %2052 = vmatprep.subr.mxu0 0.0
      %v2053 = vand.u32 %v284, 4294901760
      %2054 = vmatpush1.msra.mxu0 %v2053
      %2055 = vmatprep.subr.mxu0 0.0
      %v2056 = vand.u32 %v285, 4294901760
      %2057 = vmatpush1.msra.mxu0 %v2056
      %2058 = vmatprep.subr.mxu0 0.0
      %v2059 = vand.u32 %v286, 4294901760
      %2060 = vmatpush1.msra.mxu0 %v2059
      %2061 = vmatprep.subr.mxu0 0.0
      %v2062 = vand.u32 %v287, 4294901760
      %2063 = vmatpush1.msra.mxu0 %v2062
      %2064 = vmatprep.subr.mxu0 0.0
      %v2065 = vand.u32 %v288, 4294901760
      %2066 = vmatpush1.msra.mxu0 %v2065
      %2067 = vmatprep.subr.mxu0 0.0
      %v2068 = vand.u32 %v289, 4294901760
      %2069 = vmatpush1.msra.mxu0 %v2068
      %2070 = vmatprep.subr.mxu0 0.0
      %v2071 = vand.u32 %v290, 4294901760
      %2072 = vmatpush1.msra.mxu0 %v2071
      %2073 = vmatprep.subr.mxu0 0.0
      %v2074 = vand.u32 %v291, 4294901760
      %2075 = vmatpush1.msra.mxu0 %v2074
      %2076 = vmatprep.subr.mxu0 0.0
      %v2077 = vand.u32 %v292, 4294901760
      %2078 = vmatpush1.msra.mxu0 %v2077
      %2079 = vmatprep.subr.mxu0 0.0
      %v2080 = vand.u32 %v293, 4294901760
      %2081 = vmatpush1.msra.mxu0 %v2080
      %v2082 = vand.u32 %v351, 4294901760
      %2083 = vmatprep.mubr.f32.mxu0 %v2082
      %v2084 = vand.u32 %v349, 4294901760
      %2085 = vmatmul.mubr.f32.gmra.mrb[0].mxu0 %v2084
      %v2086 = vpop.f32.mrb[0].mxu0
      %v2087 = vadd.f32 %v1983, %v2086
      %v2088 = vpop.f32.mrb[0].mxu0
      %2089 = vdwg.mxu0
      %2090 = vmatprep.subr.mxu0 0.0
      %v2091 = vand.u32 %v294, 4294901760
      %2092 = vmatpush1.msra.mxu0 %v2091
      %2093 = vmatprep.subr.mxu0 0.0
      %v2094 = vand.u32 %v295, 4294901760
      %2095 = vmatpush1.msra.mxu0 %v2094
      %2096 = vmatprep.subr.mxu0 0.0
      %v2097 = vand.u32 %v296, 4294901760
      %2098 = vmatpush1.msra.mxu0 %v2097
      %2099 = vmatprep.subr.mxu0 0.0
      %v2100 = vand.u32 %v297, 4294901760
      %2101 = vmatpush1.msra.mxu0 %v2100
      %2102 = vmatprep.subr.mxu0 0.0
      %v2103 = vand.u32 %v298, 4294901760
      %2104 = vmatpush1.msra.mxu0 %v2103
      %2105 = vmatprep.subr.mxu0 0.0
      %v2106 = vand.u32 %v299, 4294901760
      %2107 = vmatpush1.msra.mxu0 %v2106
      %2108 = vmatprep.subr.mxu0 0.0
      %v2109 = vand.u32 %v300, 4294901760
      %2110 = vmatpush1.msra.mxu0 %v2109
      %2111 = vmatprep.subr.mxu0 0.0
      %v2112 = vand.u32 %v301, 4294901760
      %2113 = vmatpush1.msra.mxu0 %v2112
      %2114 = vmatprep.subr.mxu0 0.0
      %v2115 = vand.u32 %v302, 4294901760
      %2116 = vmatpush1.msra.mxu0 %v2115
      %2117 = vmatprep.subr.mxu0 0.0
      %v2118 = vand.u32 %v303, 4294901760
      %2119 = vmatpush1.msra.mxu0 %v2118
      %2120 = vmatprep.subr.mxu0 0.0
      %v2121 = vand.u32 %v304, 4294901760
      %2122 = vmatpush1.msra.mxu0 %v2121
      %2123 = vmatprep.subr.mxu0 0.0
      %v2124 = vand.u32 %v305, 4294901760
      %2125 = vmatpush1.msra.mxu0 %v2124
      %2126 = vmatprep.subr.mxu0 0.0
      %v2127 = vand.u32 %v306, 4294901760
      %2128 = vmatpush1.msra.mxu0 %v2127
      %2129 = vmatprep.subr.mxu0 0.0
      %v2130 = vand.u32 %v307, 4294901760
      %2131 = vmatpush1.msra.mxu0 %v2130
      %2132 = vmatprep.subr.mxu0 0.0
      %v2133 = vand.u32 %v308, 4294901760
      %2134 = vmatpush1.msra.mxu0 %v2133
      %2135 = vmatprep.subr.mxu0 0.0
      %v2136 = vand.u32 %v309, 4294901760
      %2137 = vmatpush1.msra.mxu0 %v2136
      %2138 = vmatprep.subr.mxu0 0.0
      %v2139 = vand.u32 %v310, 4294901760
      %2140 = vmatpush1.msra.mxu0 %v2139
      %2141 = vmatprep.subr.mxu0 0.0
      %v2142 = vand.u32 %v311, 4294901760
      %2143 = vmatpush1.msra.mxu0 %v2142
      %2144 = vmatprep.subr.mxu0 0.0
      %v2145 = vand.u32 %v312, 4294901760
      %2146 = vmatpush1.msra.mxu0 %v2145
      %2147 = vmatprep.subr.mxu0 0.0
      %v2148 = vand.u32 %v313, 4294901760
      %2149 = vmatpush1.msra.mxu0 %v2148
      %2150 = vmatprep.subr.mxu0 0.0
      %v2151 = vand.u32 %v314, 4294901760
      %2152 = vmatpush1.msra.mxu0 %v2151
      %2153 = vmatprep.subr.mxu0 0.0
      %v2154 = vand.u32 %v315, 4294901760
      %2155 = vmatpush1.msra.mxu0 %v2154
      %2156 = vmatprep.subr.mxu0 0.0
      %v2157 = vand.u32 %v316, 4294901760
      %2158 = vmatpush1.msra.mxu0 %v2157
      %2159 = vmatprep.subr.mxu0 0.0
      %v2160 = vand.u32 %v317, 4294901760
      %2161 = vmatpush1.msra.mxu0 %v2160
      %2162 = vmatprep.subr.mxu0 0.0
      %v2163 = vand.u32 %v318, 4294901760
      %2164 = vmatpush1.msra.mxu0 %v2163
      %2165 = vmatprep.subr.mxu0 0.0
      %v2166 = vand.u32 %v319, 4294901760
      %2167 = vmatpush1.msra.mxu0 %v2166
      %2168 = vmatprep.subr.mxu0 0.0
      %v2169 = vand.u32 %v320, 4294901760
      %2170 = vmatpush1.msra.mxu0 %v2169
      %2171 = vmatprep.subr.mxu0 0.0
      %v2172 = vand.u32 %v321, 4294901760
      %2173 = vmatpush1.msra.mxu0 %v2172
      %2174 = vmatprep.subr.mxu0 0.0
      %v2175 = vand.u32 %v322, 4294901760
      %2176 = vmatpush1.msra.mxu0 %v2175
      %2177 = vmatprep.subr.mxu0 0.0
      %v2178 = vand.u32 %v323, 4294901760
      %2179 = vmatpush1.msra.mxu0 %v2178
      %2180 = vmatprep.subr.mxu0 0.0
      %v2181 = vand.u32 %v324, 4294901760
      %2182 = vmatpush1.msra.mxu0 %v2181
      %2183 = vmatprep.subr.mxu0 0.0
      %v2184 = vand.u32 %v325, 4294901760
      %2185 = vmatpush1.msra.mxu0 %v2184
      %v2186 = vand.u32 %v359, 4294901760
      %v2187 = vsub.f32 %v359, %v2186
      %v2188 = vand.u32 %v2187, 4294901760
      %v2189 = vsub.f32 %v2187, %v2188
      %v2190 = vand.u32 %v2189, 4294901760
      %2191 = vmatprep.mubr.f32.mxu0 %v2190
      %v2192 = vand.u32 %v358, 4294901760
      %v2193 = vsub.f32 %v358, %v2192
      %v2194 = vand.u32 %v2193, 4294901760
      %v2195 = vsub.f32 %v2193, %v2194
      %v2196 = vand.u32 %v2195, 4294901760
      %2197 = vmatmul.mubr.f32.gmra.mrb[0].mxu0 %v2196
      %v2198 = vpop.f32.mrb[0].mxu0
      %v2199 = vadd.f32 %v2087, %v2198
      %v2200 = vpop.f32.mrb[0].mxu0
      %2201 = vdwg.mxu0
      %2202 = vmatprep.subr.mxu0 0.0
      %v2203 = vand.u32 %v294, 4294901760
      %v2204 = vsub.f32 %v294, %v2203
      %v2205 = vand.u32 %v2204, 4294901760
      %v2206 = vsub.f32 %v2204, %v2205
      %v2207 = vand.u32 %v2206, 4294901760
      %2208 = vmatpush1.msra.mxu0 %v2207
      %2209 = vmatprep.subr.mxu0 0.0
      %v2210 = vand.u32 %v295, 4294901760
      %v2211 = vsub.f32 %v295, %v2210
      %v2212 = vand.u32 %v2211, 4294901760
      %v2213 = vsub.f32 %v2211, %v2212
      %v2214 = vand.u32 %v2213, 4294901760
      %2215 = vmatpush1.msra.mxu0 %v2214
      %2216 = vmatprep.subr.mxu0 0.0
      %v2217 = vand.u32 %v296, 4294901760
      %v2218 = vsub.f32 %v296, %v2217
      %v2219 = vand.u32 %v2218, 4294901760
      %v2220 = vsub.f32 %v2218, %v2219
      %v2221 = vand.u32 %v2220, 4294901760
      %2222 = vmatpush1.msra.mxu0 %v2221
      %2223 = vmatprep.subr.mxu0 0.0
      %v2224 = vand.u32 %v297, 4294901760
      %v2225 = vsub.f32 %v297, %v2224
      %v2226 = vand.u32 %v2225, 4294901760
      %v2227 = vsub.f32 %v2225, %v2226
      %v2228 = vand.u32 %v2227, 4294901760
      %2229 = vmatpush1.msra.mxu0 %v2228
      %2230 = vmatprep.subr.mxu0 0.0
      %v2231 = vand.u32 %v298, 4294901760
      %v2232 = vsub.f32 %v298, %v2231
      %v2233 = vand.u32 %v2232, 4294901760
      %v2234 = vsub.f32 %v2232, %v2233
      %v2235 = vand.u32 %v2234, 4294901760
      %2236 = vmatpush1.msra.mxu0 %v2235
      %2237 = vmatprep.subr.mxu0 0.0
      %v2238 = vand.u32 %v299, 4294901760
      %v2239 = vsub.f32 %v299, %v2238
      %v2240 = vand.u32 %v2239, 4294901760
      %v2241 = vsub.f32 %v2239, %v2240
      %v2242 = vand.u32 %v2241, 4294901760
      %2243 = vmatpush1.msra.mxu0 %v2242
      %2244 = vmatprep.subr.mxu0 0.0
      %v2245 = vand.u32 %v300, 4294901760
      %v2246 = vsub.f32 %v300, %v2245
      %v2247 = vand.u32 %v2246, 4294901760
      %v2248 = vsub.f32 %v2246, %v2247
      %v2249 = vand.u32 %v2248, 4294901760
      %2250 = vmatpush1.msra.mxu0 %v2249
      %2251 = vmatprep.subr.mxu0 0.0
      %v2252 = vand.u32 %v301, 4294901760
      %v2253 = vsub.f32 %v301, %v2252
      %v2254 = vand.u32 %v2253, 4294901760
      %v2255 = vsub.f32 %v2253, %v2254
      %v2256 = vand.u32 %v2255, 4294901760
      %2257 = vmatpush1.msra.mxu0 %v2256
      %2258 = vmatprep.subr.mxu0 0.0
      %v2259 = vand.u32 %v302, 4294901760
      %v2260 = vsub.f32 %v302, %v2259
      %v2261 = vand.u32 %v2260, 4294901760
      %v2262 = vsub.f32 %v2260, %v2261
      %v2263 = vand.u32 %v2262, 4294901760
      %2264 = vmatpush1.msra.mxu0 %v2263
      %2265 = vmatprep.subr.mxu0 0.0
      %v2266 = vand.u32 %v303, 4294901760
      %v2267 = vsub.f32 %v303, %v2266
      %v2268 = vand.u32 %v2267, 4294901760
      %v2269 = vsub.f32 %v2267, %v2268
      %v2270 = vand.u32 %v2269, 4294901760
      %2271 = vmatpush1.msra.mxu0 %v2270
      %2272 = vmatprep.subr.mxu0 0.0
      %v2273 = vand.u32 %v304, 4294901760
      %v2274 = vsub.f32 %v304, %v2273
      %v2275 = vand.u32 %v2274, 4294901760
      %v2276 = vsub.f32 %v2274, %v2275
      %v2277 = vand.u32 %v2276, 4294901760
      %2278 = vmatpush1.msra.mxu0 %v2277
      %2279 = vmatprep.subr.mxu0 0.0
      %v2280 = vand.u32 %v305, 4294901760
      %v2281 = vsub.f32 %v305, %v2280
      %v2282 = vand.u32 %v2281, 4294901760
      %v2283 = vsub.f32 %v2281, %v2282
      %v2284 = vand.u32 %v2283, 4294901760
      %2285 = vmatpush1.msra.mxu0 %v2284
      %2286 = vmatprep.subr.mxu0 0.0
      %v2287 = vand.u32 %v306, 4294901760
      %v2288 = vsub.f32 %v306, %v2287
      %v2289 = vand.u32 %v2288, 4294901760
      %v2290 = vsub.f32 %v2288, %v2289
      %v2291 = vand.u32 %v2290, 4294901760
      %2292 = vmatpush1.msra.mxu0 %v2291
      %2293 = vmatprep.subr.mxu0 0.0
      %v2294 = vand.u32 %v307, 4294901760
      %v2295 = vsub.f32 %v307, %v2294
      %v2296 = vand.u32 %v2295, 4294901760
      %v2297 = vsub.f32 %v2295, %v2296
      %v2298 = vand.u32 %v2297, 4294901760
      %2299 = vmatpush1.msra.mxu0 %v2298
      %2300 = vmatprep.subr.mxu0 0.0
      %v2301 = vand.u32 %v308, 4294901760
      %v2302 = vsub.f32 %v308, %v2301
      %v2303 = vand.u32 %v2302, 4294901760
      %v2304 = vsub.f32 %v2302, %v2303
      %v2305 = vand.u32 %v2304, 4294901760
      %2306 = vmatpush1.msra.mxu0 %v2305
      %2307 = vmatprep.subr.mxu0 0.0
      %v2308 = vand.u32 %v309, 4294901760
      %v2309 = vsub.f32 %v309, %v2308
      %v2310 = vand.u32 %v2309, 4294901760
      %v2311 = vsub.f32 %v2309, %v2310
      %v2312 = vand.u32 %v2311, 4294901760
      %2313 = vmatpush1.msra.mxu0 %v2312
      %2314 = vmatprep.subr.mxu0 0.0
      %v2315 = vand.u32 %v310, 4294901760
      %v2316 = vsub.f32 %v310, %v2315
      %v2317 = vand.u32 %v2316, 4294901760
      %v2318 = vsub.f32 %v2316, %v2317
      %v2319 = vand.u32 %v2318, 4294901760
      %2320 = vmatpush1.msra.mxu0 %v2319
      %2321 = vmatprep.subr.mxu0 0.0
      %v2322 = vand.u32 %v311, 4294901760
      %v2323 = vsub.f32 %v311, %v2322
      %v2324 = vand.u32 %v2323, 4294901760
      %v2325 = vsub.f32 %v2323, %v2324
      %v2326 = vand.u32 %v2325, 4294901760
      %2327 = vmatpush1.msra.mxu0 %v2326
      %2328 = vmatprep.subr.mxu0 0.0
      %v2329 = vand.u32 %v312, 4294901760
      %v2330 = vsub.f32 %v312, %v2329
      %v2331 = vand.u32 %v2330, 4294901760
      %v2332 = vsub.f32 %v2330, %v2331
      %v2333 = vand.u32 %v2332, 4294901760
      %2334 = vmatpush1.msra.mxu0 %v2333
      %2335 = vmatprep.subr.mxu0 0.0
      %v2336 = vand.u32 %v313, 4294901760
      %v2337 = vsub.f32 %v313, %v2336
      %v2338 = vand.u32 %v2337, 4294901760
      %v2339 = vsub.f32 %v2337, %v2338
      %v2340 = vand.u32 %v2339, 4294901760
      %2341 = vmatpush1.msra.mxu0 %v2340
      %2342 = vmatprep.subr.mxu0 0.0
      %v2343 = vand.u32 %v314, 4294901760
      %v2344 = vsub.f32 %v314, %v2343
      %v2345 = vand.u32 %v2344, 4294901760
      %v2346 = vsub.f32 %v2344, %v2345
      %v2347 = vand.u32 %v2346, 4294901760
      %2348 = vmatpush1.msra.mxu0 %v2347
      %2349 = vmatprep.subr.mxu0 0.0
      %v2350 = vand.u32 %v315, 4294901760
      %v2351 = vsub.f32 %v315, %v2350
      %v2352 = vand.u32 %v2351, 4294901760
      %v2353 = vsub.f32 %v2351, %v2352
      %v2354 = vand.u32 %v2353, 4294901760
      %2355 = vmatpush1.msra.mxu0 %v2354
      %2356 = vmatprep.subr.mxu0 0.0
      %v2357 = vand.u32 %v316, 4294901760
      %v2358 = vsub.f32 %v316, %v2357
      %v2359 = vand.u32 %v2358, 4294901760
      %v2360 = vsub.f32 %v2358, %v2359
      %v2361 = vand.u32 %v2360, 4294901760
      %2362 = vmatpush1.msra.mxu0 %v2361
      %2363 = vmatprep.subr.mxu0 0.0
      %v2364 = vand.u32 %v317, 4294901760
      %v2365 = vsub.f32 %v317, %v2364
      %v2366 = vand.u32 %v2365, 4294901760
      %v2367 = vsub.f32 %v2365, %v2366
      %v2368 = vand.u32 %v2367, 4294901760
      %2369 = vmatpush1.msra.mxu0 %v2368
      %2370 = vmatprep.subr.mxu0 0.0
      %v2371 = vand.u32 %v318, 4294901760
      %v2372 = vsub.f32 %v318, %v2371
      %v2373 = vand.u32 %v2372, 4294901760
      %v2374 = vsub.f32 %v2372, %v2373
      %v2375 = vand.u32 %v2374, 4294901760
      %2376 = vmatpush1.msra.mxu0 %v2375
      %2377 = vmatprep.subr.mxu0 0.0
      %v2378 = vand.u32 %v319, 4294901760
      %v2379 = vsub.f32 %v319, %v2378
      %v2380 = vand.u32 %v2379, 4294901760
      %v2381 = vsub.f32 %v2379, %v2380
      %v2382 = vand.u32 %v2381, 4294901760
      %2383 = vmatpush1.msra.mxu0 %v2382
      %2384 = vmatprep.subr.mxu0 0.0
      %v2385 = vand.u32 %v320, 4294901760
      %v2386 = vsub.f32 %v320, %v2385
      %v2387 = vand.u32 %v2386, 4294901760
      %v2388 = vsub.f32 %v2386, %v2387
      %v2389 = vand.u32 %v2388, 4294901760
      %2390 = vmatpush1.msra.mxu0 %v2389
      %2391 = vmatprep.subr.mxu0 0.0
      %v2392 = vand.u32 %v321, 4294901760
      %v2393 = vsub.f32 %v321, %v2392
      %v2394 = vand.u32 %v2393, 4294901760
      %v2395 = vsub.f32 %v2393, %v2394
      %v2396 = vand.u32 %v2395, 4294901760
      %2397 = vmatpush1.msra.mxu0 %v2396
      %2398 = vmatprep.subr.mxu0 0.0
      %v2399 = vand.u32 %v322, 4294901760
      %v2400 = vsub.f32 %v322, %v2399
      %v2401 = vand.u32 %v2400, 4294901760
      %v2402 = vsub.f32 %v2400, %v2401
      %v2403 = vand.u32 %v2402, 4294901760
      %2404 = vmatpush1.msra.mxu0 %v2403
      %2405 = vmatprep.subr.mxu0 0.0
      %v2406 = vand.u32 %v323, 4294901760
      %v2407 = vsub.f32 %v323, %v2406
      %v2408 = vand.u32 %v2407, 4294901760
      %v2409 = vsub.f32 %v2407, %v2408
      %v2410 = vand.u32 %v2409, 4294901760
      %2411 = vmatpush1.msra.mxu0 %v2410
      %2412 = vmatprep.subr.mxu0 0.0
      %v2413 = vand.u32 %v324, 4294901760
      %v2414 = vsub.f32 %v324, %v2413
      %v2415 = vand.u32 %v2414, 4294901760
      %v2416 = vsub.f32 %v2414, %v2415
      %v2417 = vand.u32 %v2416, 4294901760
      %2418 = vmatpush1.msra.mxu0 %v2417
      %2419 = vmatprep.subr.mxu0 0.0
      %v2420 = vand.u32 %v325, 4294901760
      %v2421 = vsub.f32 %v325, %v2420
      %v2422 = vand.u32 %v2421, 4294901760
      %v2423 = vsub.f32 %v2421, %v2422
      %v2424 = vand.u32 %v2423, 4294901760
      %2425 = vmatpush1.msra.mxu0 %v2424
      %v2426 = vand.u32 %v359, 4294901760
      %2427 = vmatprep.mubr.f32.mxu0 %v2426
      %v2428 = vand.u32 %v358, 4294901760
      %2429 = vmatmul.mubr.f32.gmra.mrb[0].mxu0 %v2428
      %v2430 = vpop.f32.mrb[0].mxu0
      %v2431 = vadd.f32 %v2199, %v2430
      %v2432 = vpop.f32.mrb[0].mxu0
      %2433 = vdwg.mxu0
      %2434 = vmatprep.subr.mxu0 0.0
      %v2435 = vand.u32 %v294, 4294901760
      %v2436 = vsub.f32 %v294, %v2435
      %2437 = vmatpush1.msra.mxu0 %v2436
      %2438 = vmatprep.subr.mxu0 0.0
      %v2439 = vand.u32 %v295, 4294901760
      %v2440 = vsub.f32 %v295, %v2439
      %2441 = vmatpush1.msra.mxu0 %v2440
      %2442 = vmatprep.subr.mxu0 0.0
      %v2443 = vand.u32 %v296, 4294901760
      %v2444 = vsub.f32 %v296, %v2443
      %2445 = vmatpush1.msra.mxu0 %v2444
      %2446 = vmatprep.subr.mxu0 0.0
      %v2447 = vand.u32 %v297, 4294901760
      %v2448 = vsub.f32 %v297, %v2447
      %2449 = vmatpush1.msra.mxu0 %v2448
      %2450 = vmatprep.subr.mxu0 0.0
      %v2451 = vand.u32 %v298, 4294901760
      %v2452 = vsub.f32 %v298, %v2451
      %2453 = vmatpush1.msra.mxu0 %v2452
      %2454 = vmatprep.subr.mxu0 0.0
      %v2455 = vand.u32 %v299, 4294901760
      %v2456 = vsub.f32 %v299, %v2455
      %2457 = vmatpush1.msra.mxu0 %v2456
      %2458 = vmatprep.subr.mxu0 0.0
      %v2459 = vand.u32 %v300, 4294901760
      %v2460 = vsub.f32 %v300, %v2459
      %2461 = vmatpush1.msra.mxu0 %v2460
      %2462 = vmatprep.subr.mxu0 0.0
      %v2463 = vand.u32 %v301, 4294901760
      %v2464 = vsub.f32 %v301, %v2463
      %2465 = vmatpush1.msra.mxu0 %v2464
      %2466 = vmatprep.subr.mxu0 0.0
      %v2467 = vand.u32 %v302, 4294901760
      %v2468 = vsub.f32 %v302, %v2467
      %2469 = vmatpush1.msra.mxu0 %v2468
      %2470 = vmatprep.subr.mxu0 0.0
      %v2471 = vand.u32 %v303, 4294901760
      %v2472 = vsub.f32 %v303, %v2471
      %2473 = vmatpush1.msra.mxu0 %v2472
      %2474 = vmatprep.subr.mxu0 0.0
      %v2475 = vand.u32 %v304, 4294901760
      %v2476 = vsub.f32 %v304, %v2475
      %2477 = vmatpush1.msra.mxu0 %v2476
      %2478 = vmatprep.subr.mxu0 0.0
      %v2479 = vand.u32 %v305, 4294901760
      %v2480 = vsub.f32 %v305, %v2479
      %2481 = vmatpush1.msra.mxu0 %v2480
      %2482 = vmatprep.subr.mxu0 0.0
      %v2483 = vand.u32 %v306, 4294901760
      %v2484 = vsub.f32 %v306, %v2483
      %2485 = vmatpush1.msra.mxu0 %v2484
      %2486 = vmatprep.subr.mxu0 0.0
      %v2487 = vand.u32 %v307, 4294901760
      %v2488 = vsub.f32 %v307, %v2487
      %2489 = vmatpush1.msra.mxu0 %v2488
      %2490 = vmatprep.subr.mxu0 0.0
      %v2491 = vand.u32 %v308, 4294901760
      %v2492 = vsub.f32 %v308, %v2491
      %2493 = vmatpush1.msra.mxu0 %v2492
      %2494 = vmatprep.subr.mxu0 0.0
      %v2495 = vand.u32 %v309, 4294901760
      %v2496 = vsub.f32 %v309, %v2495
      %2497 = vmatpush1.msra.mxu0 %v2496
      %2498 = vmatprep.subr.mxu0 0.0
      %v2499 = vand.u32 %v310, 4294901760
      %v2500 = vsub.f32 %v310, %v2499
      %2501 = vmatpush1.msra.mxu0 %v2500
      %2502 = vmatprep.subr.mxu0 0.0
      %v2503 = vand.u32 %v311, 4294901760
      %v2504 = vsub.f32 %v311, %v2503
      %2505 = vmatpush1.msra.mxu0 %v2504
      %2506 = vmatprep.subr.mxu0 0.0
      %v2507 = vand.u32 %v312, 4294901760
      %v2508 = vsub.f32 %v312, %v2507
      %2509 = vmatpush1.msra.mxu0 %v2508
      %2510 = vmatprep.subr.mxu0 0.0
      %v2511 = vand.u32 %v313, 4294901760
      %v2512 = vsub.f32 %v313, %v2511
      %2513 = vmatpush1.msra.mxu0 %v2512
      %2514 = vmatprep.subr.mxu0 0.0
      %v2515 = vand.u32 %v314, 4294901760
      %v2516 = vsub.f32 %v314, %v2515
      %2517 = vmatpush1.msra.mxu0 %v2516
      %2518 = vmatprep.subr.mxu0 0.0
      %v2519 = vand.u32 %v315, 4294901760
      %v2520 = vsub.f32 %v315, %v2519
      %2521 = vmatpush1.msra.mxu0 %v2520
      %2522 = vmatprep.subr.mxu0 0.0
      %v2523 = vand.u32 %v316, 4294901760
      %v2524 = vsub.f32 %v316, %v2523
      %2525 = vmatpush1.msra.mxu0 %v2524
      %2526 = vmatprep.subr.mxu0 0.0
      %v2527 = vand.u32 %v317, 4294901760
      %v2528 = vsub.f32 %v317, %v2527
      %2529 = vmatpush1.msra.mxu0 %v2528
      %2530 = vmatprep.subr.mxu0 0.0
      %v2531 = vand.u32 %v318, 4294901760
      %v2532 = vsub.f32 %v318, %v2531
      %2533 = vmatpush1.msra.mxu0 %v2532
      %2534 = vmatprep.subr.mxu0 0.0
      %v2535 = vand.u32 %v319, 4294901760
      %v2536 = vsub.f32 %v319, %v2535
      %2537 = vmatpush1.msra.mxu0 %v2536
      %2538 = vmatprep.subr.mxu0 0.0
      %v2539 = vand.u32 %v320, 4294901760
      %v2540 = vsub.f32 %v320, %v2539
      %2541 = vmatpush1.msra.mxu0 %v2540
      %2542 = vmatprep.subr.mxu0 0.0
      %v2543 = vand.u32 %v321, 4294901760
      %v2544 = vsub.f32 %v321, %v2543
      %2545 = vmatpush1.msra.mxu0 %v2544
      %2546 = vmatprep.subr.mxu0 0.0
      %v2547 = vand.u32 %v322, 4294901760
      %v2548 = vsub.f32 %v322, %v2547
      %2549 = vmatpush1.msra.mxu0 %v2548
      %2550 = vmatprep.subr.mxu0 0.0
      %v2551 = vand.u32 %v323, 4294901760
      %v2552 = vsub.f32 %v323, %v2551
      %2553 = vmatpush1.msra.mxu0 %v2552
      %2554 = vmatprep.subr.mxu0 0.0
      %v2555 = vand.u32 %v324, 4294901760
      %v2556 = vsub.f32 %v324, %v2555
      %2557 = vmatpush1.msra.mxu0 %v2556
      %2558 = vmatprep.subr.mxu0 0.0
      %v2559 = vand.u32 %v325, 4294901760
      %v2560 = vsub.f32 %v325, %v2559
      %2561 = vmatpush1.msra.mxu0 %v2560
      %v2562 = vand.u32 %v359, 4294901760
      %v2563 = vsub.f32 %v359, %v2562
      %2564 = vmatprep.mubr.f32.mxu0 %v2563
      %v2565 = vand.u32 %v358, 4294901760
      %v2566 = vsub.f32 %v358, %v2565
      %2567 = vmatmul.mubr.f32.gmra.mrb[0].mxu0 %v2566
      %v2568 = vpop.f32.mrb[0].mxu0
      %v2569 = vadd.f32 %v2431, %v2568
      %v2570 = vpop.f32.mrb[0].mxu0
      %2571 = vdwg.mxu0
      %2572 = vmatprep.subr.mxu0 0.0
      %v2573 = vand.u32 %v294, 4294901760
      %2574 = vmatpush1.msra.mxu0 %v2573
      %2575 = vmatprep.subr.mxu0 0.0
      %v2576 = vand.u32 %v295, 4294901760
      %2577 = vmatpush1.msra.mxu0 %v2576
      %2578 = vmatprep.subr.mxu0 0.0
      %v2579 = vand.u32 %v296, 4294901760
      %2580 = vmatpush1.msra.mxu0 %v2579
      %2581 = vmatprep.subr.mxu0 0.0
      %v2582 = vand.u32 %v297, 4294901760
      %2583 = vmatpush1.msra.mxu0 %v2582
      %2584 = vmatprep.subr.mxu0 0.0
      %v2585 = vand.u32 %v298, 4294901760
      %2586 = vmatpush1.msra.mxu0 %v2585
      %2587 = vmatprep.subr.mxu0 0.0
      %v2588 = vand.u32 %v299, 4294901760
      %2589 = vmatpush1.msra.mxu0 %v2588
      %2590 = vmatprep.subr.mxu0 0.0
      %v2591 = vand.u32 %v300, 4294901760
      %2592 = vmatpush1.msra.mxu0 %v2591
      %2593 = vmatprep.subr.mxu0 0.0
      %v2594 = vand.u32 %v301, 4294901760
      %2595 = vmatpush1.msra.mxu0 %v2594
      %2596 = vmatprep.subr.mxu0 0.0
      %v2597 = vand.u32 %v302, 4294901760
      %2598 = vmatpush1.msra.mxu0 %v2597
      %2599 = vmatprep.subr.mxu0 0.0
      %v2600 = vand.u32 %v303, 4294901760
      %2601 = vmatpush1.msra.mxu0 %v2600
      %2602 = vmatprep.subr.mxu0 0.0
      %v2603 = vand.u32 %v304, 4294901760
      %2604 = vmatpush1.msra.mxu0 %v2603
      %2605 = vmatprep.subr.mxu0 0.0
      %v2606 = vand.u32 %v305, 4294901760
      %2607 = vmatpush1.msra.mxu0 %v2606
      %2608 = vmatprep.subr.mxu0 0.0
      %v2609 = vand.u32 %v306, 4294901760
      %2610 = vmatpush1.msra.mxu0 %v2609
      %2611 = vmatprep.subr.mxu0 0.0
      %v2612 = vand.u32 %v307, 4294901760
      %2613 = vmatpush1.msra.mxu0 %v2612
      %2614 = vmatprep.subr.mxu0 0.0
      %v2615 = vand.u32 %v308, 4294901760
      %2616 = vmatpush1.msra.mxu0 %v2615
      %2617 = vmatprep.subr.mxu0 0.0
      %v2618 = vand.u32 %v309, 4294901760
      %2619 = vmatpush1.msra.mxu0 %v2618
      %2620 = vmatprep.subr.mxu0 0.0
      %v2621 = vand.u32 %v310, 4294901760
      %2622 = vmatpush1.msra.mxu0 %v2621
      %2623 = vmatprep.subr.mxu0 0.0
      %v2624 = vand.u32 %v311, 4294901760
      %2625 = vmatpush1.msra.mxu0 %v2624
      %2626 = vmatprep.subr.mxu0 0.0
      %v2627 = vand.u32 %v312, 4294901760
      %2628 = vmatpush1.msra.mxu0 %v2627
      %2629 = vmatprep.subr.mxu0 0.0
      %v2630 = vand.u32 %v313, 4294901760
      %2631 = vmatpush1.msra.mxu0 %v2630
      %2632 = vmatprep.subr.mxu0 0.0
      %v2633 = vand.u32 %v314, 4294901760
      %2634 = vmatpush1.msra.mxu0 %v2633
      %2635 = vmatprep.subr.mxu0 0.0
      %v2636 = vand.u32 %v315, 4294901760
      %2637 = vmatpush1.msra.mxu0 %v2636
      %2638 = vmatprep.subr.mxu0 0.0
      %v2639 = vand.u32 %v316, 4294901760
      %2640 = vmatpush1.msra.mxu0 %v2639
      %2641 = vmatprep.subr.mxu0 0.0
      %v2642 = vand.u32 %v317, 4294901760
      %2643 = vmatpush1.msra.mxu0 %v2642
      %2644 = vmatprep.subr.mxu0 0.0
      %v2645 = vand.u32 %v318, 4294901760
      %2646 = vmatpush1.msra.mxu0 %v2645
      %2647 = vmatprep.subr.mxu0 0.0
      %v2648 = vand.u32 %v319, 4294901760
      %2649 = vmatpush1.msra.mxu0 %v2648
      %2650 = vmatprep.subr.mxu0 0.0
      %v2651 = vand.u32 %v320, 4294901760
      %2652 = vmatpush1.msra.mxu0 %v2651
      %2653 = vmatprep.subr.mxu0 0.0
      %v2654 = vand.u32 %v321, 4294901760
      %2655 = vmatpush1.msra.mxu0 %v2654
      %2656 = vmatprep.subr.mxu0 0.0
      %v2657 = vand.u32 %v322, 4294901760
      %2658 = vmatpush1.msra.mxu0 %v2657
      %2659 = vmatprep.subr.mxu0 0.0
      %v2660 = vand.u32 %v323, 4294901760
      %2661 = vmatpush1.msra.mxu0 %v2660
      %2662 = vmatprep.subr.mxu0 0.0
      %v2663 = vand.u32 %v324, 4294901760
      %2664 = vmatpush1.msra.mxu0 %v2663
      %2665 = vmatprep.subr.mxu0 0.0
      %v2666 = vand.u32 %v325, 4294901760
      %2667 = vmatpush1.msra.mxu0 %v2666
      %v2668 = vand.u32 %v359, 4294901760
      %v2669 = vsub.f32 %v359, %v2668
      %v2670 = vand.u32 %v2669, 4294901760
      %2671 = vmatprep.mubr.f32.mxu0 %v2670
      %v2672 = vand.u32 %v358, 4294901760
      %v2673 = vsub.f32 %v358, %v2672
      %v2674 = vand.u32 %v2673, 4294901760
      %2675 = vmatmul.mubr.f32.gmra.mrb[0].mxu0 %v2674
      %v2676 = vpop.f32.mrb[0].mxu0
      %v2677 = vadd.f32 %v2569, %v2676
      %v2678 = vpop.f32.mrb[0].mxu0
      %2679 = vdwg.mxu0
      %2680 = vmatprep.subr.mxu0 0.0
      %v2681 = vand.u32 %v294, 4294901760
      %v2682 = vsub.f32 %v294, %v2681
      %v2683 = vand.u32 %v2682, 4294901760
      %2684 = vmatpush1.msra.mxu0 %v2683
      %2685 = vmatprep.subr.mxu0 0.0
      %v2686 = vand.u32 %v295, 4294901760
      %v2687 = vsub.f32 %v295, %v2686
      %v2688 = vand.u32 %v2687, 4294901760
      %2689 = vmatpush1.msra.mxu0 %v2688
      %2690 = vmatprep.subr.mxu0 0.0
      %v2691 = vand.u32 %v296, 4294901760
      %v2692 = vsub.f32 %v296, %v2691
      %v2693 = vand.u32 %v2692, 4294901760
      %2694 = vmatpush1.msra.mxu0 %v2693
      %2695 = vmatprep.subr.mxu0 0.0
      %v2696 = vand.u32 %v297, 4294901760
      %v2697 = vsub.f32 %v297, %v2696
      %v2698 = vand.u32 %v2697, 4294901760
      %2699 = vmatpush1.msra.mxu0 %v2698
      %2700 = vmatprep.subr.mxu0 0.0
      %v2701 = vand.u32 %v298, 4294901760
      %v2702 = vsub.f32 %v298, %v2701
      %v2703 = vand.u32 %v2702, 4294901760
      %2704 = vmatpush1.msra.mxu0 %v2703
      %2705 = vmatprep.subr.mxu0 0.0
      %v2706 = vand.u32 %v299, 4294901760
      %v2707 = vsub.f32 %v299, %v2706
      %v2708 = vand.u32 %v2707, 4294901760
      %2709 = vmatpush1.msra.mxu0 %v2708
      %2710 = vmatprep.subr.mxu0 0.0
      %v2711 = vand.u32 %v300, 4294901760
      %v2712 = vsub.f32 %v300, %v2711
      %v2713 = vand.u32 %v2712, 4294901760
      %2714 = vmatpush1.msra.mxu0 %v2713
      %2715 = vmatprep.subr.mxu0 0.0
      %v2716 = vand.u32 %v301, 4294901760
      %v2717 = vsub.f32 %v301, %v2716
      %v2718 = vand.u32 %v2717, 4294901760
      %2719 = vmatpush1.msra.mxu0 %v2718
      %2720 = vmatprep.subr.mxu0 0.0
      %v2721 = vand.u32 %v302, 4294901760
      %v2722 = vsub.f32 %v302, %v2721
      %v2723 = vand.u32 %v2722, 4294901760
      %2724 = vmatpush1.msra.mxu0 %v2723
      %2725 = vmatprep.subr.mxu0 0.0
      %v2726 = vand.u32 %v303, 4294901760
      %v2727 = vsub.f32 %v303, %v2726
      %v2728 = vand.u32 %v2727, 4294901760
      %2729 = vmatpush1.msra.mxu0 %v2728
      %2730 = vmatprep.subr.mxu0 0.0
      %v2731 = vand.u32 %v304, 4294901760
      %v2732 = vsub.f32 %v304, %v2731
      %v2733 = vand.u32 %v2732, 4294901760
      %2734 = vmatpush1.msra.mxu0 %v2733
      %2735 = vmatprep.subr.mxu0 0.0
      %v2736 = vand.u32 %v305, 4294901760
      %v2737 = vsub.f32 %v305, %v2736
      %v2738 = vand.u32 %v2737, 4294901760
      %2739 = vmatpush1.msra.mxu0 %v2738
      %2740 = vmatprep.subr.mxu0 0.0
      %v2741 = vand.u32 %v306, 4294901760
      %v2742 = vsub.f32 %v306, %v2741
      %v2743 = vand.u32 %v2742, 4294901760
      %2744 = vmatpush1.msra.mxu0 %v2743
      %2745 = vmatprep.subr.mxu0 0.0
      %v2746 = vand.u32 %v307, 4294901760
      %v2747 = vsub.f32 %v307, %v2746
      %v2748 = vand.u32 %v2747, 4294901760
      %2749 = vmatpush1.msra.mxu0 %v2748
      %2750 = vmatprep.subr.mxu0 0.0
      %v2751 = vand.u32 %v308, 4294901760
      %v2752 = vsub.f32 %v308, %v2751
      %v2753 = vand.u32 %v2752, 4294901760
      %2754 = vmatpush1.msra.mxu0 %v2753
      %2755 = vmatprep.subr.mxu0 0.0
      %v2756 = vand.u32 %v309, 4294901760
      %v2757 = vsub.f32 %v309, %v2756
      %v2758 = vand.u32 %v2757, 4294901760
      %2759 = vmatpush1.msra.mxu0 %v2758
      %2760 = vmatprep.subr.mxu0 0.0
      %v2761 = vand.u32 %v310, 4294901760
      %v2762 = vsub.f32 %v310, %v2761
      %v2763 = vand.u32 %v2762, 4294901760
      %2764 = vmatpush1.msra.mxu0 %v2763
      %2765 = vmatprep.subr.mxu0 0.0
      %v2766 = vand.u32 %v311, 4294901760
      %v2767 = vsub.f32 %v311, %v2766
      %v2768 = vand.u32 %v2767, 4294901760
      %2769 = vmatpush1.msra.mxu0 %v2768
      %2770 = vmatprep.subr.mxu0 0.0
      %v2771 = vand.u32 %v312, 4294901760
      %v2772 = vsub.f32 %v312, %v2771
      %v2773 = vand.u32 %v2772, 4294901760
      %2774 = vmatpush1.msra.mxu0 %v2773
      %2775 = vmatprep.subr.mxu0 0.0
      %v2776 = vand.u32 %v313, 4294901760
      %v2777 = vsub.f32 %v313, %v2776
      %v2778 = vand.u32 %v2777, 4294901760
      %2779 = vmatpush1.msra.mxu0 %v2778
      %2780 = vmatprep.subr.mxu0 0.0
      %v2781 = vand.u32 %v314, 4294901760
      %v2782 = vsub.f32 %v314, %v2781
      %v2783 = vand.u32 %v2782, 4294901760
      %2784 = vmatpush1.msra.mxu0 %v2783
      %2785 = vmatprep.subr.mxu0 0.0
      %v2786 = vand.u32 %v315, 4294901760
      %v2787 = vsub.f32 %v315, %v2786
      %v2788 = vand.u32 %v2787, 4294901760
      %2789 = vmatpush1.msra.mxu0 %v2788
      %2790 = vmatprep.subr.mxu0 0.0
      %v2791 = vand.u32 %v316, 4294901760
      %v2792 = vsub.f32 %v316, %v2791
      %v2793 = vand.u32 %v2792, 4294901760
      %2794 = vmatpush1.msra.mxu0 %v2793
      %2795 = vmatprep.subr.mxu0 0.0
      %v2796 = vand.u32 %v317, 4294901760
      %v2797 = vsub.f32 %v317, %v2796
      %v2798 = vand.u32 %v2797, 4294901760
      %2799 = vmatpush1.msra.mxu0 %v2798
      %2800 = vmatprep.subr.mxu0 0.0
      %v2801 = vand.u32 %v318, 4294901760
      %v2802 = vsub.f32 %v318, %v2801
      %v2803 = vand.u32 %v2802, 4294901760
      %2804 = vmatpush1.msra.mxu0 %v2803
      %2805 = vmatprep.subr.mxu0 0.0
      %v2806 = vand.u32 %v319, 4294901760
      %v2807 = vsub.f32 %v319, %v2806
      %v2808 = vand.u32 %v2807, 4294901760
      %2809 = vmatpush1.msra.mxu0 %v2808
      %2810 = vmatprep.subr.mxu0 0.0
      %v2811 = vand.u32 %v320, 4294901760
      %v2812 = vsub.f32 %v320, %v2811
      %v2813 = vand.u32 %v2812, 4294901760
      %2814 = vmatpush1.msra.mxu0 %v2813
      %2815 = vmatprep.subr.mxu0 0.0
      %v2816 = vand.u32 %v321, 4294901760
      %v2817 = vsub.f32 %v321, %v2816
      %v2818 = vand.u32 %v2817, 4294901760
      %2819 = vmatpush1.msra.mxu0 %v2818
      %2820 = vmatprep.subr.mxu0 0.0
      %v2821 = vand.u32 %v322, 4294901760
      %v2822 = vsub.f32 %v322, %v2821
      %v2823 = vand.u32 %v2822, 4294901760
      %2824 = vmatpush1.msra.mxu0 %v2823
      %2825 = vmatprep.subr.mxu0 0.0
      %v2826 = vand.u32 %v323, 4294901760
      %v2827 = vsub.f32 %v323, %v2826
      %v2828 = vand.u32 %v2827, 4294901760
      %2829 = vmatpush1.msra.mxu0 %v2828
      %2830 = vmatprep.subr.mxu0 0.0
      %v2831 = vand.u32 %v324, 4294901760
      %v2832 = vsub.f32 %v324, %v2831
      %v2833 = vand.u32 %v2832, 4294901760
      %2834 = vmatpush1.msra.mxu0 %v2833
      %2835 = vmatprep.subr.mxu0 0.0
      %v2836 = vand.u32 %v325, 4294901760
      %v2837 = vsub.f32 %v325, %v2836
      %v2838 = vand.u32 %v2837, 4294901760
      %2839 = vmatpush1.msra.mxu0 %v2838
      %v2840 = vand.u32 %v359, 4294901760
      %2841 = vmatprep.mubr.f32.mxu0 %v2840
      %v2842 = vand.u32 %v358, 4294901760
      %2843 = vmatmul.mubr.f32.gmra.mrb[0].mxu0 %v2842
      %v2844 = vpop.f32.mrb[0].mxu0
      %v2845 = vadd.f32 %v2677, %v2844
      %v2846 = vpop.f32.mrb[0].mxu0
      %2847 = vdwg.mxu0
      %2848 = vmatprep.subr.mxu0 0.0
      %v2849 = vand.u32 %v294, 4294901760
      %2850 = vmatpush1.msra.mxu0 %v2849
      %2851 = vmatprep.subr.mxu0 0.0
      %v2852 = vand.u32 %v295, 4294901760
      %2853 = vmatpush1.msra.mxu0 %v2852
      %2854 = vmatprep.subr.mxu0 0.0
      %v2855 = vand.u32 %v296, 4294901760
      %2856 = vmatpush1.msra.mxu0 %v2855
      %2857 = vmatprep.subr.mxu0 0.0
      %v2858 = vand.u32 %v297, 4294901760
      %2859 = vmatpush1.msra.mxu0 %v2858
      %2860 = vmatprep.subr.mxu0 0.0
      %v2861 = vand.u32 %v298, 4294901760
      %2862 = vmatpush1.msra.mxu0 %v2861
      %2863 = vmatprep.subr.mxu0 0.0
      %v2864 = vand.u32 %v299, 4294901760
      %2865 = vmatpush1.msra.mxu0 %v2864
      %2866 = vmatprep.subr.mxu0 0.0
      %v2867 = vand.u32 %v300, 4294901760
      %2868 = vmatpush1.msra.mxu0 %v2867
      %2869 = vmatprep.subr.mxu0 0.0
      %v2870 = vand.u32 %v301, 4294901760
      %2871 = vmatpush1.msra.mxu0 %v2870
      %2872 = vmatprep.subr.mxu0 0.0
      %v2873 = vand.u32 %v302, 4294901760
      %2874 = vmatpush1.msra.mxu0 %v2873
      %2875 = vmatprep.subr.mxu0 0.0
      %v2876 = vand.u32 %v303, 4294901760
      %2877 = vmatpush1.msra.mxu0 %v2876
      %2878 = vmatprep.subr.mxu0 0.0
      %v2879 = vand.u32 %v304, 4294901760
      %2880 = vmatpush1.msra.mxu0 %v2879
      %2881 = vmatprep.subr.mxu0 0.0
      %v2882 = vand.u32 %v305, 4294901760
      %2883 = vmatpush1.msra.mxu0 %v2882
      %2884 = vmatprep.subr.mxu0 0.0
      %v2885 = vand.u32 %v306, 4294901760
      %2886 = vmatpush1.msra.mxu0 %v2885
      %2887 = vmatprep.subr.mxu0 0.0
      %v2888 = vand.u32 %v307, 4294901760
      %2889 = vmatpush1.msra.mxu0 %v2888
      %2890 = vmatprep.subr.mxu0 0.0
      %v2891 = vand.u32 %v308, 4294901760
      %2892 = vmatpush1.msra.mxu0 %v2891
      %2893 = vmatprep.subr.mxu0 0.0
      %v2894 = vand.u32 %v309, 4294901760
      %2895 = vmatpush1.msra.mxu0 %v2894
      %2896 = vmatprep.subr.mxu0 0.0
      %v2897 = vand.u32 %v310, 4294901760
      %2898 = vmatpush1.msra.mxu0 %v2897
      %2899 = vmatprep.subr.mxu0 0.0
      %v2900 = vand.u32 %v311, 4294901760
      %2901 = vmatpush1.msra.mxu0 %v2900
      %2902 = vmatprep.subr.mxu0 0.0
      %v2903 = vand.u32 %v312, 4294901760
      %2904 = vmatpush1.msra.mxu0 %v2903
      %2905 = vmatprep.subr.mxu0 0.0
      %v2906 = vand.u32 %v313, 4294901760
      %2907 = vmatpush1.msra.mxu0 %v2906
      %2908 = vmatprep.subr.mxu0 0.0
      %v2909 = vand.u32 %v314, 4294901760
      %2910 = vmatpush1.msra.mxu0 %v2909
      %2911 = vmatprep.subr.mxu0 0.0
      %v2912 = vand.u32 %v315, 4294901760
      %2913 = vmatpush1.msra.mxu0 %v2912
      %2914 = vmatprep.subr.mxu0 0.0
      %v2915 = vand.u32 %v316, 4294901760
      %2916 = vmatpush1.msra.mxu0 %v2915
      %2917 = vmatprep.subr.mxu0 0.0
      %v2918 = vand.u32 %v317, 4294901760
      %2919 = vmatpush1.msra.mxu0 %v2918
      %2920 = vmatprep.subr.mxu0 0.0
      %v2921 = vand.u32 %v318, 4294901760
      %2922 = vmatpush1.msra.mxu0 %v2921
      %2923 = vmatprep.subr.mxu0 0.0
      %v2924 = vand.u32 %v319, 4294901760
      %2925 = vmatpush1.msra.mxu0 %v2924
      %2926 = vmatprep.subr.mxu0 0.0
      %v2927 = vand.u32 %v320, 4294901760
      %2928 = vmatpush1.msra.mxu0 %v2927
      %2929 = vmatprep.subr.mxu0 0.0
      %v2930 = vand.u32 %v321, 4294901760
      %2931 = vmatpush1.msra.mxu0 %v2930
      %2932 = vmatprep.subr.mxu0 0.0
      %v2933 = vand.u32 %v322, 4294901760
      %2934 = vmatpush1.msra.mxu0 %v2933
      %2935 = vmatprep.subr.mxu0 0.0
      %v2936 = vand.u32 %v323, 4294901760
      %2937 = vmatpush1.msra.mxu0 %v2936
      %2938 = vmatprep.subr.mxu0 0.0
      %v2939 = vand.u32 %v324, 4294901760
      %2940 = vmatpush1.msra.mxu0 %v2939
      %2941 = vmatprep.subr.mxu0 0.0
      %v2942 = vand.u32 %v325, 4294901760
      %2943 = vmatpush1.msra.mxu0 %v2942
      %v2944 = vand.u32 %v359, 4294901760
      %2945 = vmatprep.mubr.f32.mxu0 %v2944
      %v2946 = vand.u32 %v358, 4294901760
      %2947 = vmatmul.mubr.f32.gmra.mrb[0].mxu0 %v2946
      %v2948 = vpop.f32.mrb[0].mxu0
      %v2949 = vadd.f32 %v2845, %v2948
      %v2950 = vpop.f32.mrb[0].mxu0
      %2951 = vdwg.mxu0
      %v2952 = vlaneseq
      %v2953 = vand.u32 %v2952, 127
      %v2954 = vsub.f32 0.0, %v2949
      %v2955 = vmul.f32 %v2954, 1.442695
      %v2956 = vpow.pop %v2955
      %v2957 = vadd.f32 %v2956, 1.0
      %v2958 = vrcp.pop %v2957
      %v2959 = vmul.f32 1.0, %v2958
      %vm2960 = vcmp.ge.s32.totalorder %v2953, 1
      %vm2961 = vcmp.lt.s32.totalorder %v2953, 11
      %vm2962 = vmand %vm2960, %vm2961
      %v2963 = vsel %vm2962, %v2949, -1e+30
      %vm2964 = vcmask 1041408
      %v2965 = vsel %vm2964, %v2963, -inf
      %2966 = vmax.xlane.f32.xlu0 %v2965
      %v2967 = vpop.xlane.xlu0 %2966
      %v2968 = vsub.f32 %v2963, %v2967
      %v2969 = vmul.f32 %v2968, 1.442695
      %v2970 = vpow.pop %v2969
      %v2971 = vsel %vm2962, %v2970, 0.0
      %v2972 = vsel %vm2964, %v2971, 0.0
      %2973 = vadd.xlane.f32.xlu0 %v2972
      %v2974 = vpop.xlane.xlu0 %2973
      %v2975 = vrcp.pop %v2974
      %v2976 = vmul.f32 %v2971, %v2975
      %vm2977 = vcmp.ge.s32.totalorder %v2953, 11
      %vm2978 = vcmp.lt.s32.totalorder %v2953, 16
      %vm2979 = vmand %vm2977, %vm2978
      %v2980 = vsel %vm2979, %v2949, -1e+30
      %v2981 = vsel %vm2964, %v2980, -inf
      %2982 = vmax.xlane.f32.xlu0 %v2981
      %v2983 = vpop.xlane.xlu0 %2982
      %v2984 = vsub.f32 %v2980, %v2983
      %v2985 = vmul.f32 %v2984, 1.442695
      %v2986 = vpow.pop %v2985
      %v2987 = vsel %vm2979, %v2986, 0.0
      %v2988 = vsel %vm2964, %v2987, 0.0
      %2989 = vadd.xlane.f32.xlu0 %v2988
      %v2990 = vpop.xlane.xlu0 %2989
      %v2991 = vrcp.pop %v2990
      %v2992 = vmul.f32 %v2987, %v2991
      %vm2993 = vcmp.eq.s32.totalorder %v2953, 0
      %v2994 = vsel %vm2993, %v2959, 0.0
      %v2995 = vsel %vm2962, %v2976, %v2994
      %v2996 = vsel %vm2979, %v2992, %v2995
      %2997 = vst [vmem:[#allocation8] sm:$0x3] %v2996
    $region29: #{tpu_custom_call.1} parent=1 // pred_fallthru
      _
    // Predicated region
    $region30: #{tpu_custom_call.1} parent=1 // pred_check
      _
    $region31: #{tpu_custom_call.1} parent=1 // pred_check_branch
      %2999 = sbr.rel (0) target = $region33
    $region32: #{tpu_custom_call.1} parent=1 // pred_region
      %s3001 = ssub.s32 32, 32
      %3002 = vsyncadd [#allocation5], %s3001
      %s3004 = sshll.u32 [#allocation8], 4
      %s3005 = int_to_ptr.vmem [resolvable:$true] %s3004
      %3007 = dma.vmem_to_hbm [thread:$0]  %s3005, 32, %s3, [#allocation5]
    $region33: #{tpu_custom_call.1} parent=1 // pred_fallthru
      _
    // Predicated region
    $region34: #{tpu_custom_call.1} parent=1 // pred_check
      _
    $region35: #{tpu_custom_call.1} parent=1 // pred_check_branch
      %3009 = sbr.rel (0) target = $region37
    $region36: #{tpu_custom_call.1} parent=1 // pred_region
      %3010 = dma.done [#allocation5], 32
    $region37: #{tpu_custom_call.1} parent=1 // pred_fallthru
      _
    %3011 = vsyncpa [#allocation4], 1
    %3012 = vsyncpa [#allocation7], 1
    %3013 = vsyncpa [#allocation5], 1

</llo_original>
